<compile_context>
chip_gen: v6e
topology: v6e:2x2x1
jax: 0.10.0
libtpu: 0.0.40
codegen_flags: <defaults>
</compile_context>

<pallas_src>
import functools

import jax
import jax.numpy as jnp
from jax.experimental import pallas as pl
from jax.experimental.pallas import tpu as pltpu

KSIZES = (3, 4, 5)          # conv kernel heights, as in the PyTorch module
KMAX = max(KSIZES)
C = 100                     # out_channels per conv
N_REAL = len(KSIZES) * C    # 300 real feature columns (PyTorch concat order)
F_PAD = 384                 # 300 rounded up to a multiple of 128 lanes
V_PAD = 128                 # one-hot gather requires vocab <= 128
NEG = -1e30


def _round_up(x, m):
    return (x + m - 1) // m * m


def textcnn_fe_kernel(tok_ref, w_ref, b_ref, out_ref, *, L, Lp):
    """Per batch-block: one-hot taps @ W_fused -> time mask -> max_t -> +bias -> ReLU.

    tok_ref : (1, B_BLK*Lp + 8, 1) int32  flat token ids for this batch block,
                                          -1 padded (pads match no vocab id)
    w_ref   : (5*128, 384) bf16  embedding table folded into the conv taps;
                                 columns: [k=3 ch0-99 | k=4 ch0-99 | k=5 ch0-99 | 0]
    b_ref   : (1, 384)     f32   conv biases (0 in padded lanes)
    out_ref : (B_BLK, 384) f32   pooled features (padded lanes end up exactly 0)
    """
    B_BLK, F = out_ref.shape
    rows = B_BLK * Lp

    tok = tok_ref[0]                                               # (rows + 8, 1) int32
    v_iota = jax.lax.broadcasted_iota(jnp.int32, (rows, V_PAD), 1)

    # Embedding gather + all 3 convs, one K=128 MXU dot per tap, f32 accumulation.
    acc = None
    for i in range(KMAX):                                          # static unroll (5 taps)
        oh = (tok[i:i + rows, :] == v_iota).astype(jnp.bfloat16)   # (rows, 128) 0/1
        part = jnp.dot(oh, w_ref[i * V_PAD:(i + 1) * V_PAD, :],
                       preferred_element_type=jnp.float32)         # (rows, 384) f32
        acc = part if acc is None else acc + part

    # In-kernel time-validity mask: window start t is valid for conv k iff t <= L - k.
    # (Pure VPU work, hides under the MXU; also suppresses cross-row / pad windows.)
    col = jax.lax.broadcasted_iota(jnp.int32, (Lp, F), 1)
    t = jax.lax.broadcasted_iota(jnp.int32, (Lp, F), 0)
    tmax = jnp.where(col < C, L - KSIZES[0],
                     jnp.where(col < 2 * C, L - KSIZES[1], L - KSIZES[2]))
    tmask = jnp.where(t <= tmax, 0.0, NEG).astype(jnp.float32)     # (Lp, 384)

    acc = acc.reshape(B_BLK, Lp, F) + tmask[None, :, :]            # (B_BLK, Lp, 384)
    pooled = jnp.max(acc, axis=1)                                  # (B_BLK, 384)
    # bias + ReLU after the max: ReLU monotone, bias constant over time -> identical.
    out_ref[...] = jnp.maximum(pooled + b_ref[...], 0.0).astype(out_ref.dtype)


def prepare_kernel_params(params):
    """Fold the embedding table into the conv taps; pack channels in PyTorch order."""
    table = params["emb_table"].astype(jnp.float32)                # (V, E)
    V, E = table.shape
    assert V <= V_PAD, "one-hot fused gather assumes vocab <= 128"
    table_pad = jnp.zeros((V_PAD, E), jnp.float32).at[:V, :].set(table)

    tap_rows = []
    for i in range(KMAX):
        w_tap = jnp.zeros((E, F_PAD), jnp.float32)
        for j, k in enumerate(KSIZES):
            if i < k:                                              # taps >= k stay zero
                w_tap = w_tap.at[:, j * C:(j + 1) * C].set(params[f"w{k}"][i])
        tap_rows.append(table_pad @ w_tap)                         # (V_PAD, 384)
    w_fused = jnp.concatenate(tap_rows, axis=0)                    # (5*128, 384)

    bias = jnp.zeros((1, F_PAD), jnp.float32)
    for j, k in enumerate(KSIZES):
        bias = bias.at[0, j * C:(j + 1) * C].set(params[f"b{k}"])
    return {"w_fused": w_fused.astype(jnp.bfloat16), "bias": bias}


def textcnn_fe_forward(tokens, kparams, *, b_blk=128, trim=True):
    """tokens (B, L) int32 -> (B, 300) f32 (trim=True, PyTorch layout) or the
    lane-padded (B, 384) slab (trim=False; cols 300-383 are exactly 0)."""
    B, L = tokens.shape
    assert L >= KMAX
    Lp = _round_up(L, 8)                                           # tile-aligned time axis

    # Batch-block grid sizing (single block at small B).
    if B <= b_blk:
        B_BLK, Bp = B, B
    else:
        B_BLK = b_blk
        Bp = _round_up(B, B_BLK)
    nb = Bp // B_BLK
    rows = B_BLK * Lp
    RB = rows + 8                                                  # per-block KMAX-1 lookahead

    # Token prep: -1-pad (never matches any vocab id), flatten per batch block,
    # append 8 lookahead rows per block so blocks never overlap.
    tok = jnp.full((Bp, Lp), -1, jnp.int32).at[:B, :L].set(tokens.astype(jnp.int32))
    tok = tok.reshape(nb, rows)
    tok = jnp.pad(tok, ((0, 0), (0, 8)), constant_values=-1).reshape(nb, RB, 1)

    w_fused, bias = kparams["w_fused"], kparams["bias"]
    kernel = functools.partial(textcnn_fe_kernel, L=L, Lp=Lp)

    out = pl.pallas_call(
        kernel,
        out_shape=jax.ShapeDtypeStruct((Bp, F_PAD), jnp.float32),
        grid_spec=pltpu.PrefetchScalarGridSpec(
            num_scalar_prefetch=0,
            grid=(nb,),
            in_specs=[
                pl.BlockSpec((1, RB, 1), lambda i: (i, 0, 0)),          # token block
                pl.BlockSpec((KMAX * V_PAD, F_PAD), lambda i: (0, 0)),  # weights, VMEM-resident
                pl.BlockSpec((1, F_PAD), lambda i: (0, 0)),             # bias, VMEM-resident
            ],
            out_specs=pl.BlockSpec((B_BLK, F_PAD), lambda i: (i, 0)),
        ),
        compiler_params=pltpu.CompilerParams(
            dimension_semantics=("parallel",)),                    # both TCs on v7x
        cost_estimate=pl.CostEstimate(
            flops=2 * Bp * Lp * (KMAX * V_PAD) * F_PAD,
            transcendentals=0,
            bytes_accessed=(tok.size * 4 + w_fused.size * 2
                            + bias.size * 4 + Bp * F_PAD * 4)),
    )(tok, w_fused, bias)

    if Bp != B:
        out = out[:B]
    if trim:
        # Single contiguous slice (real channels already in PyTorch concat order);
        # pass trim=False to keep the 128-lane-aligned layout for a fused consumer.
        out = out[:, :N_REAL]
    return out


def reference_forward(tokens, params):
    """Pure-JAX f32 reference of the PyTorch forward (for validation)."""
    emb = params["emb_table"][tokens]                              # (B, L, E)
    _, L, _ = emb.shape
    pooled = []
    for k in KSIZES:
        w, b = params[f"w{k}"], params[f"b{k}"]
        T = L - k + 1
        acc = sum(jnp.einsum("bte,ec->btc", emb[:, i:i + T, :], w[i]) for i in range(k)) + b
        pooled.append(jnp.max(jax.nn.relu(acc), axis=1))           # ReLU before max, as in PyTorch
    return jnp.concatenate(pooled, axis=1)                         # (B, 300)


def init_params(key, vocab_size, emb_size, n_filters=C):
    ks = jax.random.split(key, 7)
    # nn.Embedding(vocab, emb, padding_idx=0); .weight.data.uniform_(-0.1, 0.1)
    # (the uniform_ overwrites the padding row too, exactly as in the reference code).
    params = {"emb_table": jax.random.uniform(ks[0], (vocab_size, emb_size),
                                              minval=-0.1, maxval=0.1, dtype=jnp.float32)}
    for idx, k in enumerate(KSIZES):
        # PyTorch Conv2d weight (C, 1, k, E) stored transposed as (k, E, C).
        params[f"w{k}"] = jax.random.normal(ks[1 + 2 * idx], (k, emb_size, n_filters),
                                            dtype=jnp.float32) * 0.05
        params[f"b{k}"] = jax.random.normal(ks[2 + 2 * idx], (n_filters,),
                                            dtype=jnp.float32) * 0.01
    return params


if __name__ == "__main__":
    B, L = 2, 16                  # batch, sequence length (>= largest kernel 5)
    vocab_size, emb_size = 50, 32

    key = jax.random.PRNGKey(0)
    pkey, tkey = jax.random.split(key)
    params = init_params(pkey, vocab_size, emb_size)
    tokens = jax.random.randint(tkey, (B, L), 0, vocab_size, dtype=jnp.int32)

    kparams = prepare_kernel_params(params)
    feats_pad = textcnn_fe_forward(tokens, kparams, trim=False)    # (B, 384) lane-padded
    jax.block_until_ready(feats_pad)

    assert feats_pad.shape == (B, F_PAD) and feats_pad.dtype == jnp.float32
    assert float(jnp.max(jnp.abs(feats_pad[:, N_REAL:]))) == 0.0   # pad lanes exactly 0

    feats = feats_pad[:, :N_REAL]                                  # (B, 300), PyTorch order
    ref = reference_forward(tokens, params)
    err = float(jnp.max(jnp.abs(feats - ref)))
    assert err < 5e-3, f"kernel/reference mismatch: max abs err {err}"
    print("KERNEL_OK")
</pallas_src>

<mosaic_0001>
module attributes {stable_mosaic.version = 11 : i64} {
  func.func @textcnn_fe_kernel(%arg0: i32, %arg1: memref<1x40x1xi32, #tpu.memory_space<vmem>>, %arg2: memref<640x384xbf16, #tpu.memory_space<vmem>>, %arg3: memref<1x384xf32, #tpu.memory_space<vmem>>, %arg4: memref<2x384xf32, #tpu.memory_space<vmem>>) attributes {dimension_semantics = [#tpu.dimension_semantics<parallel>], iteration_bounds = array<i64: 1>, scalar_prefetch = 0 : i64, scratch_operands = 0 : i64, tpu.core_type = #tpu.core_type<tc>, window_params = [{transform_indices = @transform_0, window_bounds = array<i64: 1, 40, 1>}, {pipeline_mode = #tpu.pipeline_mode<synchronous>, transform_indices = @transform_1, window_bounds = array<i64: 640, 384>}, {pipeline_mode = #tpu.pipeline_mode<synchronous>, transform_indices = @transform_2, window_bounds = array<i64: 1, 384>}, {transform_indices = @transform_3, window_bounds = array<i64: 2, 384>}]} {
    %c0 = arith.constant 0 : index
    %c0_0 = arith.constant 0 : index
    %c0_1 = arith.constant 0 : index
    %0 = vector.load %arg1[%c0, %c0_0, %c0_1] : memref<1x40x1xi32, #tpu.memory_space<vmem>>, vector<1x40x1xi32>
    %1 = vector.shape_cast %0 : vector<1x40x1xi32> to vector<40x1xi32>
    %2 = tpu.iota {dimensions = array<i32: 1>} : vector<32x128xi32>
    %3 = vector.extract_strided_slice %1 {offsets = [0, 0], sizes = [32, 1], strides = [1, 1]} : vector<40x1xi32> to vector<32x1xi32>
    %4 = vector.broadcast %3 : vector<32x1xi32> to vector<32x128xi32>
    %5 = arith.cmpi eq, %4, %2 : vector<32x128xi32>
    %6 = arith.extui %5 : vector<32x128xi1> to vector<32x128xi32>
    %7 = arith.sitofp %6 : vector<32x128xi32> to vector<32x128xf32>
    %8 = arith.truncf %7 : vector<32x128xf32> to vector<32x128xbf16>
    %c0_2 = arith.constant 0 : index
    %c0_3 = arith.constant 0 : index
    %9 = vector.load %arg2[%c0_2, %c0_3] : memref<640x384xbf16, #tpu.memory_space<vmem>>, vector<128x384xbf16>
    %cst = arith.constant dense<0.000000e+00> : vector<32x384xf32>
    %10 = tpu.matmul %8, %9, %cst {dimension_numbers = #tpu.dot_dimension_numbers<[1], [0], [0], [1], [0, 0, 1, 1], [], []>} : vector<32x128xbf16>, vector<128x384xbf16>, vector<32x384xf32> -> vector<32x384xf32>
    %11 = vector.extract_strided_slice %1 {offsets = [1, 0], sizes = [32, 1], strides = [1, 1]} : vector<40x1xi32> to vector<32x1xi32>
    %12 = vector.broadcast %11 : vector<32x1xi32> to vector<32x128xi32>
    %13 = arith.cmpi eq, %12, %2 : vector<32x128xi32>
    %14 = arith.extui %13 : vector<32x128xi1> to vector<32x128xi32>
    %15 = arith.sitofp %14 : vector<32x128xi32> to vector<32x128xf32>
    %16 = arith.truncf %15 : vector<32x128xf32> to vector<32x128xbf16>
    %c128 = arith.constant 128 : index
    %c0_4 = arith.constant 0 : index
    %17 = vector.load %arg2[%c128, %c0_4] : memref<640x384xbf16, #tpu.memory_space<vmem>>, vector<128x384xbf16>
    %cst_5 = arith.constant dense<0.000000e+00> : vector<32x384xf32>
    %18 = tpu.matmul %16, %17, %cst_5 {dimension_numbers = #tpu.dot_dimension_numbers<[1], [0], [0], [1], [0, 0, 1, 1], [], []>} : vector<32x128xbf16>, vector<128x384xbf16>, vector<32x384xf32> -> vector<32x384xf32>
    %19 = arith.addf %10, %18 : vector<32x384xf32>
    %20 = vector.extract_strided_slice %1 {offsets = [2, 0], sizes = [32, 1], strides = [1, 1]} : vector<40x1xi32> to vector<32x1xi32>
    %21 = vector.broadcast %20 : vector<32x1xi32> to vector<32x128xi32>
    %22 = arith.cmpi eq, %21, %2 : vector<32x128xi32>
    %23 = arith.extui %22 : vector<32x128xi1> to vector<32x128xi32>
    %24 = arith.sitofp %23 : vector<32x128xi32> to vector<32x128xf32>
    %25 = arith.truncf %24 : vector<32x128xf32> to vector<32x128xbf16>
    %c256 = arith.constant 256 : index
    %c0_6 = arith.constant 0 : index
    %26 = vector.load %arg2[%c256, %c0_6] : memref<640x384xbf16, #tpu.memory_space<vmem>>, vector<128x384xbf16>
    %cst_7 = arith.constant dense<0.000000e+00> : vector<32x384xf32>
    %27 = tpu.matmul %25, %26, %cst_7 {dimension_numbers = #tpu.dot_dimension_numbers<[1], [0], [0], [1], [0, 0, 1, 1], [], []>} : vector<32x128xbf16>, vector<128x384xbf16>, vector<32x384xf32> -> vector<32x384xf32>
    %28 = arith.addf %19, %27 : vector<32x384xf32>
    %29 = vector.extract_strided_slice %1 {offsets = [3, 0], sizes = [32, 1], strides = [1, 1]} : vector<40x1xi32> to vector<32x1xi32>
    %30 = vector.broadcast %29 : vector<32x1xi32> to vector<32x128xi32>
    %31 = arith.cmpi eq, %30, %2 : vector<32x128xi32>
    %32 = arith.extui %31 : vector<32x128xi1> to vector<32x128xi32>
    %33 = arith.sitofp %32 : vector<32x128xi32> to vector<32x128xf32>
    %34 = arith.truncf %33 : vector<32x128xf32> to vector<32x128xbf16>
    %c384 = arith.constant 384 : index
    %c0_8 = arith.constant 0 : index
    %35 = vector.load %arg2[%c384, %c0_8] : memref<640x384xbf16, #tpu.memory_space<vmem>>, vector<128x384xbf16>
    %cst_9 = arith.constant dense<0.000000e+00> : vector<32x384xf32>
    %36 = tpu.matmul %34, %35, %cst_9 {dimension_numbers = #tpu.dot_dimension_numbers<[1], [0], [0], [1], [0, 0, 1, 1], [], []>} : vector<32x128xbf16>, vector<128x384xbf16>, vector<32x384xf32> -> vector<32x384xf32>
    %37 = arith.addf %28, %36 : vector<32x384xf32>
    %38 = vector.extract_strided_slice %1 {offsets = [4, 0], sizes = [32, 1], strides = [1, 1]} : vector<40x1xi32> to vector<32x1xi32>
    %39 = vector.broadcast %38 : vector<32x1xi32> to vector<32x128xi32>
    %40 = arith.cmpi eq, %39, %2 : vector<32x128xi32>
    %41 = arith.extui %40 : vector<32x128xi1> to vector<32x128xi32>
    %42 = arith.sitofp %41 : vector<32x128xi32> to vector<32x128xf32>
    %43 = arith.truncf %42 : vector<32x128xf32> to vector<32x128xbf16>
    %c512 = arith.constant 512 : index
    %c0_10 = arith.constant 0 : index
    %44 = vector.load %arg2[%c512, %c0_10] : memref<640x384xbf16, #tpu.memory_space<vmem>>, vector<128x384xbf16>
    %cst_11 = arith.constant dense<0.000000e+00> : vector<32x384xf32>
    %45 = tpu.matmul %43, %44, %cst_11 {dimension_numbers = #tpu.dot_dimension_numbers<[1], [0], [0], [1], [0, 0, 1, 1], [], []>} : vector<32x128xbf16>, vector<128x384xbf16>, vector<32x384xf32> -> vector<32x384xf32>
    %46 = arith.addf %37, %45 : vector<32x384xf32>
    %47 = tpu.iota {dimensions = array<i32: 1>} : vector<16x384xi32>
    %48 = tpu.iota {dimensions = array<i32: 0>} : vector<16x384xi32>
    %c100_i32 = arith.constant 100 : i32
    %49 = vector.broadcast %c100_i32 : i32 to vector<16x384xi32>
    %50 = arith.cmpi slt, %47, %49 : vector<16x384xi32>
    %c200_i32 = arith.constant 200 : i32
    %51 = vector.broadcast %c200_i32 : i32 to vector<16x384xi32>
    %52 = arith.cmpi slt, %47, %51 : vector<16x384xi32>
    %c12_i32 = arith.constant 12 : i32
    %c11_i32 = arith.constant 11 : i32
    %53 = vector.broadcast %c12_i32 : i32 to vector<16x384xi32>
    %54 = vector.broadcast %c11_i32 : i32 to vector<16x384xi32>
    %55 = arith.select %52, %53, %54 : vector<16x384xi1>, vector<16x384xi32>
    %c13_i32 = arith.constant 13 : i32
    %56 = vector.broadcast %c13_i32 : i32 to vector<16x384xi32>
    %57 = arith.select %50, %56, %55 : vector<16x384xi1>, vector<16x384xi32>
    %58 = arith.cmpi sle, %48, %57 : vector<16x384xi32>
    %cst_12 = arith.constant 0.000000e+00 : f32
    %cst_13 = arith.constant -1.000000e+30 : f32
    %59 = vector.broadcast %cst_12 : f32 to vector<16x384xf32>
    %60 = vector.broadcast %cst_13 : f32 to vector<16x384xf32>
    %61 = arith.select %58, %59, %60 : vector<16x384xi1>, vector<16x384xf32>
    %62 = vector.shape_cast %46 : vector<32x384xf32> to vector<2x16x384xf32>
    %63 = vector.shape_cast %61 : vector<16x384xf32> to vector<1x16x384xf32>
    %64 = vector.broadcast %63 : vector<1x16x384xf32> to vector<2x16x384xf32>
    %65 = arith.addf %62, %64 : vector<2x16x384xf32>
    %cst_14 = arith.constant dense<0xFF800000> : vector<2x384xf32>
    %66 = vector.multi_reduction <maximumf>, %65, %cst_14 [1] : vector<2x16x384xf32> to vector<2x384xf32>
    %c0_15 = arith.constant 0 : index
    %c0_16 = arith.constant 0 : index
    %67 = vector.load %arg3[%c0_15, %c0_16] : memref<1x384xf32, #tpu.memory_space<vmem>>, vector<1x384xf32>
    %68 = vector.broadcast %67 : vector<1x384xf32> to vector<2x384xf32>
    %69 = arith.addf %66, %68 : vector<2x384xf32>
    %cst_17 = arith.constant 0.000000e+00 : f32
    %70 = vector.broadcast %cst_17 : f32 to vector<2x384xf32>
    %71 = arith.maximumf %69, %70 : vector<2x384xf32>
    %c0_18 = arith.constant 0 : index
    %c0_19 = arith.constant 0 : index
    %72 = vector.load %arg4[%c0_18, %c0_19] : memref<2x384xf32, #tpu.memory_space<vmem>>, vector<2x384xf32>
    tpu.vector_store %arg4[%c0_18, %c0_19], %71 {strides = array<i32>} : memref<2x384xf32, #tpu.memory_space<vmem>>, vector<2x384xf32>,
    return
  }
  func.func @transform_0(%arg0: i32) -> (i32, i32, i32) {
    %c0_i32 = arith.constant 0 : i32
    %c0_i32_0 = arith.constant 0 : i32
    %c0_i32_1 = arith.constant 0 : i32
    return %arg0, %c0_i32, %c0_i32_0 : i32, i32, i32
  }
  func.func @transform_1(%arg0: i32) -> (i32, i32) {
    %c0_i32 = arith.constant 0 : i32
    %c0_i32_0 = arith.constant 0 : i32
    %c0_i32_1 = arith.constant 0 : i32
    return %c0_i32, %c0_i32_0 : i32, i32
  }
  func.func @transform_2(%arg0: i32) -> (i32, i32) {
    %c0_i32 = arith.constant 0 : i32
    %c0_i32_0 = arith.constant 0 : i32
    %c0_i32_1 = arith.constant 0 : i32
    return %c0_i32, %c0_i32_0 : i32, i32
  }
  func.func @transform_3(%arg0: i32) -> (i32, i32) {
    %c0_i32 = arith.constant 0 : i32
    %c0_i32_0 = arith.constant 0 : i32
    return %arg0, %c0_i32 : i32, i32
  }
}

</mosaic_0001>

<llo_original>
// kernel: tpu_custom_call.1
$region0: #{tpu_custom_call.1}
  #allocation0 [shape = 'u32[]', space=smem, size = 0x4, offset = 0x4, fixed_abs, tag = 'smem constant byte address 0x4 - core index']
  #allocation1 [shape = 'u32[144,128]{1,0:T(1,128)}', space=vmem, size = 0x12000, scoped, tag = 'internal scratch']
  %s0 = inlined_call_operand.vmem [shape: s32[1,40,1], index: 0, kind: input, shape index: {}]
  %s1 = inlined_call_operand.hbm [shape: bf16[640,384], index: 1, kind: input, shape index: {}]
  %s2 = inlined_call_operand.vmem [shape: f32[1,384], index: 2, kind: input, shape index: {}]
  %s3 = inlined_call_operand.hbm [shape: f32[2,384], index: 3, kind: output, shape index: {}]
  %s4 = sld [smem:[#allocation0]]
  $region26: #{tpu_custom_call.1} parent=0
    _
  %s6 = ssub.s32 1, %s4
  %s7 = scalar_select 0, %s6, %s4
  $region1: #{tpu_custom_call.1} parent=0
    #allocation2 [shape = 'u8[491520]{0}', space=vmem, size = 0x78000, scoped, tag = 'input window, operand 1, single buffered']
    #allocation3 [shape = 's32[1]{0}', space=sflag, size = 0x4, scoped, tag = 'scoped memory for tpu_custom_call.1']
    #allocation4 [shape = 's32[1]{0}', space=sflag, size = 0x4, scoped, tag = 'scoped memory for tpu_custom_call.1']
    #allocation5 [shape = 'u8[3072]{0}', space=vmem, size = 0xc00, scoped, tag = 'output window, operand 0, single buffered']
    %8 = vsyncpa [#allocation3], 0
    %9 = vsyncpa [#allocation4], 0
    // Predicated region
    $region2: #{tpu_custom_call.1} parent=1 // pred_check
      _
    $region3: #{tpu_custom_call.1} parent=1 // pred_check_branch
      %11 = sbr.rel (0) target = $region5
    $region4: #{tpu_custom_call.1} parent=1 // pred_region
      _
    $region5: #{tpu_custom_call.1} parent=1 // pred_fallthru
      _
    // Predicated region
    $region6: #{tpu_custom_call.1} parent=1 // pred_check
      _
    $region7: #{tpu_custom_call.1} parent=1 // pred_check_branch
      %13 = sbr.rel (0) target = $region9
    $region8: #{tpu_custom_call.1} parent=1 // pred_region
      %s15 = ssub.s32 15360, 15360
      %16 = vsyncadd [#allocation3], %s15
      %s17 = sshll.u32 [#allocation2], 4
      %s18 = int_to_ptr.vmem [resolvable:$true] %s17
      %23 = dma.hbm_to_vmem [thread:$0]  %s1, 15360, %s18, [#allocation3], 192, 192, 12
    $region9: #{tpu_custom_call.1} parent=1 // pred_fallthru
      _
    // Predicated region
    $region10: #{tpu_custom_call.1} parent=1 // pred_check
      _
    $region11: #{tpu_custom_call.1} parent=1 // pred_check_branch
      %25 = sbr.rel (0) target = $region13
    $region12: #{tpu_custom_call.1} parent=1 // pred_region
      _
    $region13: #{tpu_custom_call.1} parent=1 // pred_fallthru
      _
    // Predicated region
    $region14: #{tpu_custom_call.1} parent=1 // pred_check
      _
    $region15: #{tpu_custom_call.1} parent=1 // pred_check_branch
      %27 = sbr.rel (0) target = $region17
    $region16: #{tpu_custom_call.1} parent=1 // pred_region
      %28 = dma.done [#allocation3], 15360
    $region17: #{tpu_custom_call.1} parent=1 // pred_fallthru
      _
    %v30 = vld [vmem:[%s0] sm:$0xff]
    %v31 = vld [vmem:[%s0 + $0x8] sm:$0xff]
    %v32 = vld [vmem:[%s0 + $0x10] sm:$0xff]
    %v33 = vld [vmem:[%s0 + $0x18] sm:$0xff]
    %v34 = vld [vmem:[%s0 + $0x20] sm:$0xff]
    %v35 = vlaneseq
    %v36 = vand.u32 %v35, 127
    %37 = vset.pattern.permute.xlu0 0
    %38 = vperm.xlu0 %37, %v30
    %v39 = vpop.permute.xlu0 %38
    %40 = vset.pattern.permute.xlu0 0
    %41 = vperm.xlu0 %40, %v31
    %v42 = vpop.permute.xlu0 %41
    %43 = vset.pattern.permute.xlu0 0
    %44 = vperm.xlu0 %43, %v32
    %v45 = vpop.permute.xlu0 %44
    %46 = vset.pattern.permute.xlu0 0
    %47 = vperm.xlu0 %46, %v33
    %v48 = vpop.permute.xlu0 %47
    %vm49 = vcmp.eq.s32.totalorder %v39, %v36
    %vm50 = vcmp.eq.s32.totalorder %v42, %v36
    %vm51 = vcmp.eq.s32.totalorder %v45, %v36
    %vm52 = vcmp.eq.s32.totalorder %v48, %v36
    %v53 = vsel %vm49, 1, 0
    %v54 = vsel %vm50, 1, 0
    %v55 = vsel %vm51, 1, 0
    %v56 = vsel %vm52, 1, 0
    %v57 = vcvt.s32.f32 %v53
    %v58 = vcvt.s32.f32 %v54
    %v59 = vcvt.s32.f32 %v55
    %v60 = vcvt.s32.f32 %v56
    %v61 = vpack.c.bf16 %v58, %v57
    %v62 = vpack.c.bf16 %v60, %v59
    %v63 = vld [vmem:[#allocation2] sm:$0xff]
    %v64 = vld [vmem:[#allocation2 + $0x8] sm:$0xf]
    %v65 = vld [vmem:[#allocation2 + $0xc] sm:$0xff]
    %v66 = vld [vmem:[#allocation2 + $0x14] sm:$0xf]
    %v67 = vld [vmem:[#allocation2 + $0x18] sm:$0xff]
    %v68 = vld [vmem:[#allocation2 + $0x20] sm:$0xf]
    %v69 = vld [vmem:[#allocation2 + $0x24] sm:$0xff]
    %v70 = vld [vmem:[#allocation2 + $0x2c] sm:$0xf]
    %v71 = vld [vmem:[#allocation2 + $0x30] sm:$0xff]
    %v72 = vld [vmem:[#allocation2 + $0x38] sm:$0xf]
    %v73 = vld [vmem:[#allocation2 + $0x3c] sm:$0xff]
    %v74 = vld [vmem:[#allocation2 + $0x44] sm:$0xf]
    %v75 = vld [vmem:[#allocation2 + $0x48] sm:$0xff]
    %v76 = vld [vmem:[#allocation2 + $0x50] sm:$0xf]
    %v77 = vld [vmem:[#allocation2 + $0x54] sm:$0xff]
    %v78 = vld [vmem:[#allocation2 + $0x5c] sm:$0xf]
    %v79 = vld [vmem:[#allocation2 + $0x60] sm:$0xff]
    %v80 = vld [vmem:[#allocation2 + $0x68] sm:$0xf]
    %v81 = vld [vmem:[#allocation2 + $0x6c] sm:$0xff]
    %v82 = vld [vmem:[#allocation2 + $0x74] sm:$0xf]
    %v83 = vld [vmem:[#allocation2 + $0x78] sm:$0xff]
    %v84 = vld [vmem:[#allocation2 + $0x80] sm:$0xf]
    %v85 = vld [vmem:[#allocation2 + $0x84] sm:$0xff]
    %v86 = vld [vmem:[#allocation2 + $0x8c] sm:$0xf]
    %v87 = vld [vmem:[#allocation2 + $0x90] sm:$0xff]
    %v88 = vld [vmem:[#allocation2 + $0x98] sm:$0xf]
    %v89 = vld [vmem:[#allocation2 + $0x9c] sm:$0xff]
    %v90 = vld [vmem:[#allocation2 + $0xa4] sm:$0xf]
    %v91 = vld [vmem:[#allocation2 + $0xa8] sm:$0xff]
    %v92 = vld [vmem:[#allocation2 + $0xb0] sm:$0xf]
    %v93 = vld [vmem:[#allocation2 + $0xb4] sm:$0xff]
    %v94 = vld [vmem:[#allocation2 + $0xbc] sm:$0xf]
    %95 = vset.pattern.permute.xlu0 0
    %96 = vperm.xlu0 %95, %v34
    %v97 = vpop.permute.xlu0 %96
    %vm98 = vcmp.eq.s32.totalorder %v97, %v36
    %v99 = vsel %vm98, 1, 0
    %v100 = vcvt.s32.f32 %v99
    %v101 = vpack.c.bf16 %v100, %v100
    %v102 = vld [vmem:[#allocation2 + $0xc0] sm:$0xff]
    %v103 = vld [vmem:[#allocation2 + $0xc8] sm:$0xf]
    %v104 = vld [vmem:[#allocation2 + $0xcc] sm:$0xff]
    %v105 = vld [vmem:[#allocation2 + $0xd4] sm:$0xf]
    %v106 = vld [vmem:[#allocation2 + $0xd8] sm:$0xff]
    %v107 = vld [vmem:[#allocation2 + $0xe0] sm:$0xf]
    %v108 = vld [vmem:[#allocation2 + $0xe4] sm:$0xff]
    %v109 = vld [vmem:[#allocation2 + $0xec] sm:$0xf]
    %v110 = vld [vmem:[#allocation2 + $0xf0] sm:$0xff]
    %v111 = vld [vmem:[#allocation2 + $0xf8] sm:$0xf]
    %v112 = vld [vmem:[#allocation2 + $0xfc] sm:$0xff]
    %v113 = vld [vmem:[#allocation2 + $0x104] sm:$0xf]
    %v114 = vld [vmem:[#allocation2 + $0x108] sm:$0xff]
    %v115 = vld [vmem:[#allocation2 + $0x110] sm:$0xf]
    %v116 = vld [vmem:[#allocation2 + $0x114] sm:$0xff]
    %v117 = vld [vmem:[#allocation2 + $0x11c] sm:$0xf]
    %v118 = vld [vmem:[#allocation2 + $0x120] sm:$0xff]
    %v119 = vld [vmem:[#allocation2 + $0x128] sm:$0xf]
    %v120 = vld [vmem:[#allocation2 + $0x12c] sm:$0xff]
    %v121 = vld [vmem:[#allocation2 + $0x134] sm:$0xf]
    %v122 = vld [vmem:[#allocation2 + $0x138] sm:$0xff]
    %v123 = vld [vmem:[#allocation2 + $0x140] sm:$0xf]
    %v124 = vld [vmem:[#allocation2 + $0x144] sm:$0xff]
    %v125 = vld [vmem:[#allocation2 + $0x14c] sm:$0xf]
    %v126 = vld [vmem:[#allocation2 + $0x150] sm:$0xff]
    %v127 = vld [vmem:[#allocation2 + $0x158] sm:$0xf]
    %v128 = vld [vmem:[#allocation2 + $0x15c] sm:$0xff]
    %v129 = vld [vmem:[#allocation2 + $0x164] sm:$0xf]
    %v130 = vld [vmem:[#allocation2 + $0x168] sm:$0xff]
    %v131 = vld [vmem:[#allocation2 + $0x170] sm:$0xf]
    %v132 = vld [vmem:[#allocation2 + $0x174] sm:$0xff]
    %v133 = vld [vmem:[#allocation2 + $0x17c] sm:$0xf]
    %vm134 = vsmask.f32 7424
    %v136 = vshrl.u32 %v61, 16
    %v138 = vshll.u32 %v61, 16
    %v140 = vrot.slane %v138, 1
    %v141 = vor.u32 %v136, %v140
    %v143 = vshll.u32 %v62, 16
    %v145 = vrot.slane %v143, 1
    %v146 = vsel %vm134, %v141, %v145
    %v147 = vshrl.u32 %v62, 16
    %v149 = vor.u32 %v147, %v145
    %v151 = vshll.u32 %v101, 16
    %v153 = vrot.slane %v151, 1
    %v154 = vsel %vm134, %v149, %v153
    %v189 = vunpack.c.l.b16 %v102
    %v190 = vunpack.c.h.b16 %v102
    %v191 = vunpack.c.l.b16 %v103
    %v192 = vunpack.c.l.b16 %v104
    %v193 = vunpack.c.h.b16 %v104
    %v194 = vunpack.c.l.b16 %v105
    %v195 = vunpack.c.l.b16 %v106
    %v196 = vunpack.c.h.b16 %v106
    %v197 = vunpack.c.l.b16 %v107
    %v198 = vunpack.c.l.b16 %v108
    %v199 = vunpack.c.h.b16 %v108
    %v200 = vunpack.c.l.b16 %v109
    %v201 = vunpack.c.l.b16 %v110
    %v202 = vunpack.c.h.b16 %v110
    %v203 = vunpack.c.l.b16 %v111
    %v204 = vunpack.c.l.b16 %v112
    %v205 = vunpack.c.h.b16 %v112
    %v206 = vunpack.c.l.b16 %v113
    %v207 = vunpack.c.l.b16 %v114
    %v208 = vunpack.c.h.b16 %v114
    %v209 = vunpack.c.l.b16 %v115
    %v210 = vunpack.c.l.b16 %v116
    %v211 = vunpack.c.h.b16 %v116
    %v212 = vunpack.c.l.b16 %v117
    %v213 = vunpack.c.l.b16 %v118
    %v214 = vunpack.c.h.b16 %v118
    %v215 = vunpack.c.l.b16 %v119
    %v216 = vunpack.c.l.b16 %v120
    %v217 = vunpack.c.h.b16 %v120
    %v218 = vunpack.c.l.b16 %v121
    %v219 = vunpack.c.l.b16 %v122
    %v220 = vunpack.c.h.b16 %v122
    %v221 = vunpack.c.l.b16 %v123
    %v222 = vunpack.c.l.b16 %v124
    %v223 = vunpack.c.h.b16 %v124
    %v224 = vunpack.c.l.b16 %v125
    %v225 = vunpack.c.l.b16 %v126
    %v226 = vunpack.c.h.b16 %v126
    %v227 = vunpack.c.l.b16 %v127
    %v228 = vunpack.c.l.b16 %v128
    %v229 = vunpack.c.h.b16 %v128
    %v230 = vunpack.c.l.b16 %v129
    %v231 = vunpack.c.l.b16 %v130
    %v232 = vunpack.c.h.b16 %v130
    %v233 = vunpack.c.l.b16 %v131
    %v234 = vunpack.c.l.b16 %v132
    %v235 = vunpack.c.h.b16 %v132
    %v236 = vunpack.c.l.b16 %v133
    %v237 = vpack.c.b16 %v192, %v189
    %v238 = vpack.c.b16 %v193, %v190
    %v239 = vpack.c.b16 %v194, %v191
    %v240 = vpack.c.b16 %v198, %v195
    %v241 = vpack.c.b16 %v199, %v196
    %v242 = vpack.c.b16 %v200, %v197
    %v243 = vpack.c.b16 %v204, %v201
    %v244 = vpack.c.b16 %v205, %v202
    %v245 = vpack.c.b16 %v206, %v203
    %v246 = vpack.c.b16 %v210, %v207
    %v247 = vpack.c.b16 %v211, %v208
    %v248 = vpack.c.b16 %v212, %v209
    %v249 = vpack.c.b16 %v216, %v213
    %v250 = vpack.c.b16 %v217, %v214
    %v251 = vpack.c.b16 %v218, %v215
    %v252 = vpack.c.b16 %v222, %v219
    %v253 = vpack.c.b16 %v223, %v220
    %v254 = vpack.c.b16 %v224, %v221
    %v255 = vpack.c.b16 %v228, %v225
    %v256 = vpack.c.b16 %v229, %v226
    %v257 = vpack.c.b16 %v230, %v227
    %v258 = vpack.c.b16 %v234, %v231
    %v259 = vpack.c.b16 %v235, %v232
    %v260 = vpack.c.b16 %v236, %v233
    %285 = vmatprep.subr.bf16.mxu0 %v259
    %286 = vmatpush1.bf16.msra.mxu0 %v258
    %287 = vmatprep.subr.bf16.mxu0 %v256
    %288 = vmatpush1.bf16.msra.mxu0 %v255
    %289 = vmatprep.subr.bf16.mxu0 %v253
    %290 = vmatpush1.bf16.msra.mxu0 %v252
    %291 = vmatprep.subr.bf16.mxu0 %v250
    %292 = vmatpush1.bf16.msra.mxu0 %v249
    %293 = vmatprep.subr.bf16.mxu0 %v247
    %294 = vmatpush1.bf16.msra.mxu0 %v246
    %295 = vmatprep.subr.bf16.mxu0 %v244
    %296 = vmatpush1.bf16.msra.mxu0 %v243
    %297 = vmatprep.subr.bf16.mxu0 %v241
    %298 = vmatpush1.bf16.msra.mxu0 %v240
    %299 = vmatprep.subr.bf16.mxu0 %v238
    %300 = vmatpush1.bf16.msra.mxu0 %v237
    %301 = vmatprep.subr.bf16.mxu0 0
    %302 = vmatpush2.bf16.msra.mxu0 0
    %303 = vmatprep.subr.bf16.mxu0 0
    %304 = vmatpush2.bf16.msra.mxu0 0
    %305 = vmatprep.subr.bf16.mxu0 0
    %306 = vmatpush2.bf16.msra.mxu0 0
    %307 = vmatprep.subr.bf16.mxu0 0
    %308 = vmatpush2.bf16.msra.mxu0 0
    %309 = vmatprep.subr.bf16.mxu0 0
    %310 = vmatpush2.bf16.msra.mxu0 0
    %311 = vmatprep.subr.bf16.mxu0 0
    %312 = vmatpush2.bf16.msra.mxu0 0
    %313 = vmatprep.subr.bf16.mxu0 0
    %314 = vmatpush2.bf16.msra.mxu0 0
    %315 = vmatprep.subr.bf16.mxu0 0
    %316 = vmatpush2.bf16.msra.mxu0 0
    %317 = vmatprep.mubr.bf16.mxu0 0
    %318 = vmatmul.mubr.bf16.gmra.mxu0 %v146
    %v319 = vpop.f32.mrf.mxu0
    %v320 = vadd.f32 0.0, %v319
    %v321 = vpop.f32.mrf.mxu0
    %v322 = vadd.f32 0.0, %v321
    %v323 = vpop.f32.mrf.mxu0
    %v324 = vadd.f32 0.0, %v323
    %v325 = vpop.f32.mrf.mxu0
    %v326 = vadd.f32 0.0, %v325
    %327 = vmatprep.mubr.bf16.mxu0 0
    %328 = vmatmul.mubr.bf16.gmra.mxu0 %v154
    %v329 = vpop.f32.mrf.mxu0
    %v330 = vadd.f32 0.0, %v329
    %v331 = vpop.f32.mrf.mxu0
    %v332 = vadd.f32 0.0, %v331
    %v333 = vpop.f32.mrf.mxu0
    %v334 = vadd.f32 0.0, %v333
    %v335 = vpop.f32.mrf.mxu0
    %v336 = vadd.f32 0.0, %v335
    %337 = vdwg.mxu0
    %338 = vmatprep.subr.bf16.mxu0 0
    %339 = vmatpush1.bf16.msra.mxu0 %v260
    %340 = vmatprep.subr.bf16.mxu0 0
    %341 = vmatpush1.bf16.msra.mxu0 %v257
    %342 = vmatprep.subr.bf16.mxu0 0
    %343 = vmatpush1.bf16.msra.mxu0 %v254
    %344 = vmatprep.subr.bf16.mxu0 0
    %345 = vmatpush1.bf16.msra.mxu0 %v251
    %346 = vmatprep.subr.bf16.mxu0 0
    %347 = vmatpush1.bf16.msra.mxu0 %v248
    %348 = vmatprep.subr.bf16.mxu0 0
    %349 = vmatpush1.bf16.msra.mxu0 %v245
    %350 = vmatprep.subr.bf16.mxu0 0
    %351 = vmatpush1.bf16.msra.mxu0 %v242
    %352 = vmatprep.subr.bf16.mxu0 0
    %353 = vmatpush1.bf16.msra.mxu0 %v239
    %354 = vmatprep.subr.bf16.mxu0 0
    %355 = vmatpush2.bf16.msra.mxu0 0
    %356 = vmatprep.subr.bf16.mxu0 0
    %357 = vmatpush2.bf16.msra.mxu0 0
    %358 = vmatprep.subr.bf16.mxu0 0
    %359 = vmatpush2.bf16.msra.mxu0 0
    %360 = vmatprep.subr.bf16.mxu0 0
    %361 = vmatpush2.bf16.msra.mxu0 0
    %362 = vmatprep.subr.bf16.mxu0 0
    %363 = vmatpush2.bf16.msra.mxu0 0
    %364 = vmatprep.subr.bf16.mxu0 0
    %365 = vmatpush2.bf16.msra.mxu0 0
    %366 = vmatprep.subr.bf16.mxu0 0
    %367 = vmatpush2.bf16.msra.mxu0 0
    %368 = vmatprep.subr.bf16.mxu0 0
    %369 = vmatpush2.bf16.msra.mxu0 0
    %370 = vmatprep.mubr.bf16.mxu0 0
    %371 = vmatmul.mubr.bf16.gmra.mxu0 %v146
    %v372 = vpop.f32.mrf.mxu0
    %v373 = vadd.f32 0.0, %v372
    %v374 = vpop.f32.mrf.mxu0
    %v375 = vpop.f32.mrf.mxu0
    %v376 = vadd.f32 0.0, %v375
    %v377 = vpop.f32.mrf.mxu0
    %378 = vmatprep.mubr.bf16.mxu0 0
    %379 = vmatmul.mubr.bf16.gmra.mxu0 %v154
    %v380 = vpop.f32.mrf.mxu0
    %v381 = vadd.f32 0.0, %v380
    %v382 = vpop.f32.mrf.mxu0
    %v383 = vpop.f32.mrf.mxu0
    %v384 = vadd.f32 0.0, %v383
    %v385 = vpop.f32.mrf.mxu0
    %386 = vdwg.mxu0
    %v419 = vunpack.c.l.b16 %v63
    %v420 = vunpack.c.h.b16 %v63
    %v421 = vunpack.c.l.b16 %v64
    %v422 = vunpack.c.l.b16 %v65
    %v423 = vunpack.c.h.b16 %v65
    %v424 = vunpack.c.l.b16 %v66
    %v425 = vunpack.c.l.b16 %v67
    %v426 = vunpack.c.h.b16 %v67
    %v427 = vunpack.c.l.b16 %v68
    %v428 = vunpack.c.l.b16 %v69
    %v429 = vunpack.c.h.b16 %v69
    %v430 = vunpack.c.l.b16 %v70
    %v431 = vunpack.c.l.b16 %v71
    %v432 = vunpack.c.h.b16 %v71
    %v433 = vunpack.c.l.b16 %v72
    %v434 = vunpack.c.l.b16 %v73
    %v435 = vunpack.c.h.b16 %v73
    %v436 = vunpack.c.l.b16 %v74
    %v437 = vunpack.c.l.b16 %v75
    %v438 = vunpack.c.h.b16 %v75
    %v439 = vunpack.c.l.b16 %v76
    %v440 = vunpack.c.l.b16 %v77
    %v441 = vunpack.c.h.b16 %v77
    %v442 = vunpack.c.l.b16 %v78
    %v443 = vunpack.c.l.b16 %v79
    %v444 = vunpack.c.h.b16 %v79
    %v445 = vunpack.c.l.b16 %v80
    %v446 = vunpack.c.l.b16 %v81
    %v447 = vunpack.c.h.b16 %v81
    %v448 = vunpack.c.l.b16 %v82
    %v449 = vunpack.c.l.b16 %v83
    %v450 = vunpack.c.h.b16 %v83
    %v451 = vunpack.c.l.b16 %v84
    %v452 = vunpack.c.l.b16 %v85
    %v453 = vunpack.c.h.b16 %v85
    %v454 = vunpack.c.l.b16 %v86
    %v455 = vunpack.c.l.b16 %v87
    %v456 = vunpack.c.h.b16 %v87
    %v457 = vunpack.c.l.b16 %v88
    %v458 = vunpack.c.l.b16 %v89
    %v459 = vunpack.c.h.b16 %v89
    %v460 = vunpack.c.l.b16 %v90
    %v461 = vunpack.c.l.b16 %v91
    %v462 = vunpack.c.h.b16 %v91
    %v463 = vunpack.c.l.b16 %v92
    %v464 = vunpack.c.l.b16 %v93
    %v465 = vunpack.c.h.b16 %v93
    %v466 = vunpack.c.l.b16 %v94
    %v467 = vpack.c.b16 %v422, %v419
    %v468 = vpack.c.b16 %v423, %v420
    %v469 = vpack.c.b16 %v424, %v421
    %v470 = vpack.c.b16 %v428, %v425
    %v471 = vpack.c.b16 %v429, %v426
    %v472 = vpack.c.b16 %v430, %v427
    %v473 = vpack.c.b16 %v434, %v431
    %v474 = vpack.c.b16 %v435, %v432
    %v475 = vpack.c.b16 %v436, %v433
    %v476 = vpack.c.b16 %v440, %v437
    %v477 = vpack.c.b16 %v441, %v438
    %v478 = vpack.c.b16 %v442, %v439
    %v479 = vpack.c.b16 %v446, %v443
    %v480 = vpack.c.b16 %v447, %v444
    %v481 = vpack.c.b16 %v448, %v445
    %v482 = vpack.c.b16 %v452, %v449
    %v483 = vpack.c.b16 %v453, %v450
    %v484 = vpack.c.b16 %v454, %v451
    %v485 = vpack.c.b16 %v458, %v455
    %v486 = vpack.c.b16 %v459, %v456
    %v487 = vpack.c.b16 %v460, %v457
    %v488 = vpack.c.b16 %v464, %v461
    %v489 = vpack.c.b16 %v465, %v462
    %v490 = vpack.c.b16 %v466, %v463
    %515 = vmatprep.subr.bf16.mxu0 %v489
    %516 = vmatpush1.bf16.msra.mxu0 %v488
    %517 = vmatprep.subr.bf16.mxu0 %v486
    %518 = vmatpush1.bf16.msra.mxu0 %v485
    %519 = vmatprep.subr.bf16.mxu0 %v483
    %520 = vmatpush1.bf16.msra.mxu0 %v482
    %521 = vmatprep.subr.bf16.mxu0 %v480
    %522 = vmatpush1.bf16.msra.mxu0 %v479
    %523 = vmatprep.subr.bf16.mxu0 %v477
    %524 = vmatpush1.bf16.msra.mxu0 %v476
    %525 = vmatprep.subr.bf16.mxu0 %v474
    %526 = vmatpush1.bf16.msra.mxu0 %v473
    %527 = vmatprep.subr.bf16.mxu0 %v471
    %528 = vmatpush1.bf16.msra.mxu0 %v470
    %529 = vmatprep.subr.bf16.mxu0 %v468
    %530 = vmatpush1.bf16.msra.mxu0 %v467
    %531 = vmatprep.subr.bf16.mxu0 0
    %532 = vmatpush2.bf16.msra.mxu0 0
    %533 = vmatprep.subr.bf16.mxu0 0
    %534 = vmatpush2.bf16.msra.mxu0 0
    %535 = vmatprep.subr.bf16.mxu0 0
    %536 = vmatpush2.bf16.msra.mxu0 0
    %537 = vmatprep.subr.bf16.mxu0 0
    %538 = vmatpush2.bf16.msra.mxu0 0
    %539 = vmatprep.subr.bf16.mxu0 0
    %540 = vmatpush2.bf16.msra.mxu0 0
    %541 = vmatprep.subr.bf16.mxu0 0
    %542 = vmatpush2.bf16.msra.mxu0 0
    %543 = vmatprep.subr.bf16.mxu0 0
    %544 = vmatpush2.bf16.msra.mxu0 0
    %545 = vmatprep.subr.bf16.mxu0 0
    %546 = vmatpush2.bf16.msra.mxu0 0
    %547 = vmatprep.mubr.bf16.mxu0 0
    %548 = vmatmul.mubr.bf16.gmra.mxu0 %v61
    %v549 = vpop.f32.mrf.mxu0
    %v550 = vadd.f32 %v320, %v549
    %v551 = vpop.f32.mrf.mxu0
    %v552 = vadd.f32 %v322, %v551
    %v553 = vpop.f32.mrf.mxu0
    %v554 = vadd.f32 %v324, %v553
    %v555 = vpop.f32.mrf.mxu0
    %v556 = vadd.f32 %v326, %v555
    %557 = vmatprep.mubr.bf16.mxu0 0
    %558 = vmatmul.mubr.bf16.gmra.mxu0 %v62
    %v559 = vpop.f32.mrf.mxu0
    %v560 = vadd.f32 %v330, %v559
    %v561 = vpop.f32.mrf.mxu0
    %v562 = vadd.f32 %v332, %v561
    %v563 = vpop.f32.mrf.mxu0
    %v564 = vadd.f32 %v334, %v563
    %v565 = vpop.f32.mrf.mxu0
    %v566 = vadd.f32 %v336, %v565
    %567 = vdwg.mxu0
    %568 = vmatprep.subr.bf16.mxu0 0
    %569 = vmatpush1.bf16.msra.mxu0 %v490
    %570 = vmatprep.subr.bf16.mxu0 0
    %571 = vmatpush1.bf16.msra.mxu0 %v487
    %572 = vmatprep.subr.bf16.mxu0 0
    %573 = vmatpush1.bf16.msra.mxu0 %v484
    %574 = vmatprep.subr.bf16.mxu0 0
    %575 = vmatpush1.bf16.msra.mxu0 %v481
    %576 = vmatprep.subr.bf16.mxu0 0
    %577 = vmatpush1.bf16.msra.mxu0 %v478
    %578 = vmatprep.subr.bf16.mxu0 0
    %579 = vmatpush1.bf16.msra.mxu0 %v475
    %580 = vmatprep.subr.bf16.mxu0 0
    %581 = vmatpush1.bf16.msra.mxu0 %v472
    %582 = vmatprep.subr.bf16.mxu0 0
    %583 = vmatpush1.bf16.msra.mxu0 %v469
    %584 = vmatprep.subr.bf16.mxu0 0
    %585 = vmatpush2.bf16.msra.mxu0 0
    %586 = vmatprep.subr.bf16.mxu0 0
    %587 = vmatpush2.bf16.msra.mxu0 0
    %588 = vmatprep.subr.bf16.mxu0 0
    %589 = vmatpush2.bf16.msra.mxu0 0
    %590 = vmatprep.subr.bf16.mxu0 0
    %591 = vmatpush2.bf16.msra.mxu0 0
    %592 = vmatprep.subr.bf16.mxu0 0
    %593 = vmatpush2.bf16.msra.mxu0 0
    %594 = vmatprep.subr.bf16.mxu0 0
    %595 = vmatpush2.bf16.msra.mxu0 0
    %596 = vmatprep.subr.bf16.mxu0 0
    %597 = vmatpush2.bf16.msra.mxu0 0
    %598 = vmatprep.subr.bf16.mxu0 0
    %599 = vmatpush2.bf16.msra.mxu0 0
    %600 = vmatprep.mubr.bf16.mxu0 0
    %601 = vmatmul.mubr.bf16.gmra.mxu0 %v61
    %v602 = vpop.f32.mrf.mxu0
    %v603 = vadd.f32 %v373, %v602
    %v604 = vpop.f32.mrf.mxu0
    %v605 = vpop.f32.mrf.mxu0
    %v606 = vadd.f32 %v376, %v605
    %v607 = vpop.f32.mrf.mxu0
    %608 = vmatprep.mubr.bf16.mxu0 0
    %609 = vmatmul.mubr.bf16.gmra.mxu0 %v62
    %v610 = vpop.f32.mrf.mxu0
    %v611 = vadd.f32 %v381, %v610
    %v612 = vpop.f32.mrf.mxu0
    %v613 = vpop.f32.mrf.mxu0
    %v614 = vadd.f32 %v384, %v613
    %v615 = vpop.f32.mrf.mxu0
    %616 = vdwg.mxu0
    %v617 = vld [vmem:[#allocation2 + $0x180] sm:$0xff]
    %v618 = vld [vmem:[#allocation2 + $0x188] sm:$0xf]
    %v619 = vld [vmem:[#allocation2 + $0x18c] sm:$0xff]
    %v620 = vld [vmem:[#allocation2 + $0x194] sm:$0xf]
    %v621 = vld [vmem:[#allocation2 + $0x198] sm:$0xff]
    %v622 = vld [vmem:[#allocation2 + $0x1a0] sm:$0xf]
    %v623 = vld [vmem:[#allocation2 + $0x1a4] sm:$0xff]
    %v624 = vld [vmem:[#allocation2 + $0x1ac] sm:$0xf]
    %v625 = vld [vmem:[#allocation2 + $0x1b0] sm:$0xff]
    %v626 = vld [vmem:[#allocation2 + $0x1b8] sm:$0xf]
    %v627 = vld [vmem:[#allocation2 + $0x1bc] sm:$0xff]
    %v628 = vld [vmem:[#allocation2 + $0x1c4] sm:$0xf]
    %v629 = vld [vmem:[#allocation2 + $0x1c8] sm:$0xff]
    %v630 = vld [vmem:[#allocation2 + $0x1d0] sm:$0xf]
    %v631 = vld [vmem:[#allocation2 + $0x1d4] sm:$0xff]
    %v632 = vld [vmem:[#allocation2 + $0x1dc] sm:$0xf]
    %v633 = vld [vmem:[#allocation2 + $0x1e0] sm:$0xff]
    %v634 = vld [vmem:[#allocation2 + $0x1e8] sm:$0xf]
    %v635 = vld [vmem:[#allocation2 + $0x1ec] sm:$0xff]
    %v636 = vld [vmem:[#allocation2 + $0x1f4] sm:$0xf]
    %v637 = vld [vmem:[#allocation2 + $0x1f8] sm:$0xff]
    %v638 = vld [vmem:[#allocation2 + $0x200] sm:$0xf]
    %v639 = vld [vmem:[#allocation2 + $0x204] sm:$0xff]
    %v640 = vld [vmem:[#allocation2 + $0x20c] sm:$0xf]
    %v641 = vld [vmem:[#allocation2 + $0x210] sm:$0xff]
    %v642 = vld [vmem:[#allocation2 + $0x218] sm:$0xf]
    %v643 = vld [vmem:[#allocation2 + $0x21c] sm:$0xff]
    %v644 = vld [vmem:[#allocation2 + $0x224] sm:$0xf]
    %v645 = vld [vmem:[#allocation2 + $0x228] sm:$0xff]
    %v646 = vld [vmem:[#allocation2 + $0x230] sm:$0xf]
    %v647 = vld [vmem:[#allocation2 + $0x234] sm:$0xff]
    %v648 = vld [vmem:[#allocation2 + $0x23c] sm:$0xf]
    %vm652 = vcmask 1046528
    %v653 = vrot.slane %v61, 1
    %v654 = vrot.slane %v62, 1
    %v655 = vsel %vm652, %v653, %v654
    %v656 = vrot.slane %v101, 1
    %v657 = vsel %vm652, %v654, %v656
    %v692 = vunpack.c.l.b16 %v617
    %v693 = vunpack.c.h.b16 %v617
    %v694 = vunpack.c.l.b16 %v618
    %v695 = vunpack.c.l.b16 %v619
    %v696 = vunpack.c.h.b16 %v619
    %v697 = vunpack.c.l.b16 %v620
    %v698 = vunpack.c.l.b16 %v621
    %v699 = vunpack.c.h.b16 %v621
    %v700 = vunpack.c.l.b16 %v622
    %v701 = vunpack.c.l.b16 %v623
    %v702 = vunpack.c.h.b16 %v623
    %v703 = vunpack.c.l.b16 %v624
    %v704 = vunpack.c.l.b16 %v625
    %v705 = vunpack.c.h.b16 %v625
    %v706 = vunpack.c.l.b16 %v626
    %v707 = vunpack.c.l.b16 %v627
    %v708 = vunpack.c.h.b16 %v627
    %v709 = vunpack.c.l.b16 %v628
    %v710 = vunpack.c.l.b16 %v629
    %v711 = vunpack.c.h.b16 %v629
    %v712 = vunpack.c.l.b16 %v630
    %v713 = vunpack.c.l.b16 %v631
    %v714 = vunpack.c.h.b16 %v631
    %v715 = vunpack.c.l.b16 %v632
    %v716 = vunpack.c.l.b16 %v633
    %v717 = vunpack.c.h.b16 %v633
    %v718 = vunpack.c.l.b16 %v634
    %v719 = vunpack.c.l.b16 %v635
    %v720 = vunpack.c.h.b16 %v635
    %v721 = vunpack.c.l.b16 %v636
    %v722 = vunpack.c.l.b16 %v637
    %v723 = vunpack.c.h.b16 %v637
    %v724 = vunpack.c.l.b16 %v638
    %v725 = vunpack.c.l.b16 %v639
    %v726 = vunpack.c.h.b16 %v639
    %v727 = vunpack.c.l.b16 %v640
    %v728 = vunpack.c.l.b16 %v641
    %v729 = vunpack.c.h.b16 %v641
    %v730 = vunpack.c.l.b16 %v642
    %v731 = vunpack.c.l.b16 %v643
    %v732 = vunpack.c.h.b16 %v643
    %v733 = vunpack.c.l.b16 %v644
    %v734 = vunpack.c.l.b16 %v645
    %v735 = vunpack.c.h.b16 %v645
    %v736 = vunpack.c.l.b16 %v646
    %v737 = vunpack.c.l.b16 %v647
    %v738 = vunpack.c.h.b16 %v647
    %v739 = vunpack.c.l.b16 %v648
    %v740 = vpack.c.b16 %v695, %v692
    %v741 = vpack.c.b16 %v696, %v693
    %v742 = vpack.c.b16 %v697, %v694
    %v743 = vpack.c.b16 %v701, %v698
    %v744 = vpack.c.b16 %v702, %v699
    %v745 = vpack.c.b16 %v703, %v700
    %v746 = vpack.c.b16 %v707, %v704
    %v747 = vpack.c.b16 %v708, %v705
    %v748 = vpack.c.b16 %v709, %v706
    %v749 = vpack.c.b16 %v713, %v710
    %v750 = vpack.c.b16 %v714, %v711
    %v751 = vpack.c.b16 %v715, %v712
    %v752 = vpack.c.b16 %v719, %v716
    %v753 = vpack.c.b16 %v720, %v717
    %v754 = vpack.c.b16 %v721, %v718
    %v755 = vpack.c.b16 %v725, %v722
    %v756 = vpack.c.b16 %v726, %v723
    %v757 = vpack.c.b16 %v727, %v724
    %v758 = vpack.c.b16 %v731, %v728
    %v759 = vpack.c.b16 %v732, %v729
    %v760 = vpack.c.b16 %v733, %v730
    %v761 = vpack.c.b16 %v737, %v734
    %v762 = vpack.c.b16 %v738, %v735
    %v763 = vpack.c.b16 %v739, %v736
    %788 = vmatprep.subr.bf16.mxu0 %v762
    %789 = vmatpush1.bf16.msra.mxu0 %v761
    %790 = vmatprep.subr.bf16.mxu0 %v759
    %791 = vmatpush1.bf16.msra.mxu0 %v758
    %792 = vmatprep.subr.bf16.mxu0 %v756
    %793 = vmatpush1.bf16.msra.mxu0 %v755
    %794 = vmatprep.subr.bf16.mxu0 %v753
    %795 = vmatpush1.bf16.msra.mxu0 %v752
    %796 = vmatprep.subr.bf16.mxu0 %v750
    %797 = vmatpush1.bf16.msra.mxu0 %v749
    %798 = vmatprep.subr.bf16.mxu0 %v747
    %799 = vmatpush1.bf16.msra.mxu0 %v746
    %800 = vmatprep.subr.bf16.mxu0 %v744
    %801 = vmatpush1.bf16.msra.mxu0 %v743
    %802 = vmatprep.subr.bf16.mxu0 %v741
    %803 = vmatpush1.bf16.msra.mxu0 %v740
    %804 = vmatprep.subr.bf16.mxu0 0
    %805 = vmatpush2.bf16.msra.mxu0 0
    %806 = vmatprep.subr.bf16.mxu0 0
    %807 = vmatpush2.bf16.msra.mxu0 0
    %808 = vmatprep.subr.bf16.mxu0 0
    %809 = vmatpush2.bf16.msra.mxu0 0
    %810 = vmatprep.subr.bf16.mxu0 0
    %811 = vmatpush2.bf16.msra.mxu0 0
    %812 = vmatprep.subr.bf16.mxu0 0
    %813 = vmatpush2.bf16.msra.mxu0 0
    %814 = vmatprep.subr.bf16.mxu0 0
    %815 = vmatpush2.bf16.msra.mxu0 0
    %816 = vmatprep.subr.bf16.mxu0 0
    %817 = vmatpush2.bf16.msra.mxu0 0
    %818 = vmatprep.subr.bf16.mxu0 0
    %819 = vmatpush2.bf16.msra.mxu0 0
    %820 = vmatprep.mubr.bf16.mxu0 0
    %821 = vmatmul.mubr.bf16.gmra.mxu0 %v655
    %v822 = vpop.f32.mrf.mxu0
    %v823 = vadd.f32 0.0, %v822
    %v824 = vpop.f32.mrf.mxu0
    %v825 = vadd.f32 0.0, %v824
    %v826 = vpop.f32.mrf.mxu0
    %v827 = vadd.f32 0.0, %v826
    %v828 = vpop.f32.mrf.mxu0
    %v829 = vadd.f32 0.0, %v828
    %830 = vmatprep.mubr.bf16.mxu0 0
    %831 = vmatmul.mubr.bf16.gmra.mxu0 %v657
    %v832 = vpop.f32.mrf.mxu0
    %v833 = vadd.f32 0.0, %v832
    %v834 = vpop.f32.mrf.mxu0
    %v835 = vadd.f32 0.0, %v834
    %v836 = vpop.f32.mrf.mxu0
    %v837 = vadd.f32 0.0, %v836
    %v838 = vpop.f32.mrf.mxu0
    %v839 = vadd.f32 0.0, %v838
    %840 = vdwg.mxu0
    %841 = vmatprep.subr.bf16.mxu0 0
    %842 = vmatpush1.bf16.msra.mxu0 %v763
    %843 = vmatprep.subr.bf16.mxu0 0
    %844 = vmatpush1.bf16.msra.mxu0 %v760
    %845 = vmatprep.subr.bf16.mxu0 0
    %846 = vmatpush1.bf16.msra.mxu0 %v757
    %847 = vmatprep.subr.bf16.mxu0 0
    %848 = vmatpush1.bf16.msra.mxu0 %v754
    %849 = vmatprep.subr.bf16.mxu0 0
    %850 = vmatpush1.bf16.msra.mxu0 %v751
    %851 = vmatprep.subr.bf16.mxu0 0
    %852 = vmatpush1.bf16.msra.mxu0 %v748
    %853 = vmatprep.subr.bf16.mxu0 0
    %854 = vmatpush1.bf16.msra.mxu0 %v745
    %855 = vmatprep.subr.bf16.mxu0 0
    %856 = vmatpush1.bf16.msra.mxu0 %v742
    %857 = vmatprep.subr.bf16.mxu0 0
    %858 = vmatpush2.bf16.msra.mxu0 0
    %859 = vmatprep.subr.bf16.mxu0 0
    %860 = vmatpush2.bf16.msra.mxu0 0
    %861 = vmatprep.subr.bf16.mxu0 0
    %862 = vmatpush2.bf16.msra.mxu0 0
    %863 = vmatprep.subr.bf16.mxu0 0
    %864 = vmatpush2.bf16.msra.mxu0 0
    %865 = vmatprep.subr.bf16.mxu0 0
    %866 = vmatpush2.bf16.msra.mxu0 0
    %867 = vmatprep.subr.bf16.mxu0 0
    %868 = vmatpush2.bf16.msra.mxu0 0
    %869 = vmatprep.subr.bf16.mxu0 0
    %870 = vmatpush2.bf16.msra.mxu0 0
    %871 = vmatprep.subr.bf16.mxu0 0
    %872 = vmatpush2.bf16.msra.mxu0 0
    %873 = vmatprep.mubr.bf16.mxu0 0
    %874 = vmatmul.mubr.bf16.gmra.mxu0 %v655
    %v875 = vpop.f32.mrf.mxu0
    %v876 = vadd.f32 0.0, %v875
    %v877 = vpop.f32.mrf.mxu0
    %v878 = vpop.f32.mrf.mxu0
    %v879 = vadd.f32 0.0, %v878
    %v880 = vpop.f32.mrf.mxu0
    %881 = vmatprep.mubr.bf16.mxu0 0
    %882 = vmatmul.mubr.bf16.gmra.mxu0 %v657
    %v883 = vpop.f32.mrf.mxu0
    %v884 = vadd.f32 0.0, %v883
    %v885 = vpop.f32.mrf.mxu0
    %v886 = vpop.f32.mrf.mxu0
    %v887 = vadd.f32 0.0, %v886
    %v888 = vpop.f32.mrf.mxu0
    %889 = vdwg.mxu0
    %v890 = vadd.f32 %v550, %v823
    %v891 = vadd.f32 %v552, %v825
    %v892 = vadd.f32 %v603, %v876
    %v893 = vadd.f32 %v554, %v827
    %v894 = vadd.f32 %v556, %v829
    %v895 = vadd.f32 %v606, %v879
    %v896 = vadd.f32 %v560, %v833
    %v897 = vadd.f32 %v562, %v835
    %v898 = vadd.f32 %v611, %v884
    %v899 = vadd.f32 %v564, %v837
    %v900 = vadd.f32 %v566, %v839
    %v901 = vadd.f32 %v614, %v887
    %v902 = vld [vmem:[#allocation2 + $0x240] sm:$0xff]
    %v903 = vld [vmem:[#allocation2 + $0x248] sm:$0xf]
    %v904 = vld [vmem:[#allocation2 + $0x24c] sm:$0xff]
    %v905 = vld [vmem:[#allocation2 + $0x254] sm:$0xf]
    %v906 = vld [vmem:[#allocation2 + $0x258] sm:$0xff]
    %v907 = vld [vmem:[#allocation2 + $0x260] sm:$0xf]
    %v908 = vld [vmem:[#allocation2 + $0x264] sm:$0xff]
    %v909 = vld [vmem:[#allocation2 + $0x26c] sm:$0xf]
    %v910 = vld [vmem:[#allocation2 + $0x270] sm:$0xff]
    %v911 = vld [vmem:[#allocation2 + $0x278] sm:$0xf]
    %v912 = vld [vmem:[#allocation2 + $0x27c] sm:$0xff]
    %v913 = vld [vmem:[#allocation2 + $0x284] sm:$0xf]
    %v914 = vld [vmem:[#allocation2 + $0x288] sm:$0xff]
    %v915 = vld [vmem:[#allocation2 + $0x290] sm:$0xf]
    %v916 = vld [vmem:[#allocation2 + $0x294] sm:$0xff]
    %v917 = vld [vmem:[#allocation2 + $0x29c] sm:$0xf]
    %v918 = vld [vmem:[#allocation2 + $0x2a0] sm:$0xff]
    %v919 = vld [vmem:[#allocation2 + $0x2a8] sm:$0xf]
    %v920 = vld [vmem:[#allocation2 + $0x2ac] sm:$0xff]
    %v921 = vld [vmem:[#allocation2 + $0x2b4] sm:$0xf]
    %v922 = vld [vmem:[#allocation2 + $0x2b8] sm:$0xff]
    %v923 = vld [vmem:[#allocation2 + $0x2c0] sm:$0xf]
    %v924 = vld [vmem:[#allocation2 + $0x2c4] sm:$0xff]
    %v925 = vld [vmem:[#allocation2 + $0x2cc] sm:$0xf]
    %v926 = vld [vmem:[#allocation2 + $0x2d0] sm:$0xff]
    %v927 = vld [vmem:[#allocation2 + $0x2d8] sm:$0xf]
    %v928 = vld [vmem:[#allocation2 + $0x2dc] sm:$0xff]
    %v929 = vld [vmem:[#allocation2 + $0x2e4] sm:$0xf]
    %v930 = vld [vmem:[#allocation2 + $0x2e8] sm:$0xff]
    %v931 = vld [vmem:[#allocation2 + $0x2f0] sm:$0xf]
    %v932 = vld [vmem:[#allocation2 + $0x2f4] sm:$0xff]
    %v933 = vld [vmem:[#allocation2 + $0x2fc] sm:$0xf]
    %vm934 = vsmask.f32 6400
    %v935 = vrot.slane %v136, 1
    %v936 = vrot.slane %v138, 2
    %v937 = vor.u32 %v935, %v936
    %v938 = vrot.slane %v147, 1
    %v939 = vrot.slane %v143, 2
    %v940 = vor.u32 %v938, %v939
    %v941 = vsel %vm934, %v937, %v940
    %v942 = vshrl.u32 %v101, 16
    %v944 = vrot.slane %v942, 1
    %v945 = vrot.slane %v151, 2
    %v946 = vor.u32 %v944, %v945
    %v947 = vsel %vm934, %v940, %v946
    %v982 = vunpack.c.l.b16 %v902
    %v983 = vunpack.c.h.b16 %v902
    %v984 = vunpack.c.l.b16 %v903
    %v985 = vunpack.c.l.b16 %v904
    %v986 = vunpack.c.h.b16 %v904
    %v987 = vunpack.c.l.b16 %v905
    %v988 = vunpack.c.l.b16 %v906
    %v989 = vunpack.c.h.b16 %v906
    %v990 = vunpack.c.l.b16 %v907
    %v991 = vunpack.c.l.b16 %v908
    %v992 = vunpack.c.h.b16 %v908
    %v993 = vunpack.c.l.b16 %v909
    %v994 = vunpack.c.l.b16 %v910
    %v995 = vunpack.c.h.b16 %v910
    %v996 = vunpack.c.l.b16 %v911
    %v997 = vunpack.c.l.b16 %v912
    %v998 = vunpack.c.h.b16 %v912
    %v999 = vunpack.c.l.b16 %v913
    %v1000 = vunpack.c.l.b16 %v914
    %v1001 = vunpack.c.h.b16 %v914
    %v1002 = vunpack.c.l.b16 %v915
    %v1003 = vunpack.c.l.b16 %v916
    %v1004 = vunpack.c.h.b16 %v916
    %v1005 = vunpack.c.l.b16 %v917
    %v1006 = vunpack.c.l.b16 %v918
    %v1007 = vunpack.c.h.b16 %v918
    %v1008 = vunpack.c.l.b16 %v919
    %v1009 = vunpack.c.l.b16 %v920
    %v1010 = vunpack.c.h.b16 %v920
    %v1011 = vunpack.c.l.b16 %v921
    %v1012 = vunpack.c.l.b16 %v922
    %v1013 = vunpack.c.h.b16 %v922
    %v1014 = vunpack.c.l.b16 %v923
    %v1015 = vunpack.c.l.b16 %v924
    %v1016 = vunpack.c.h.b16 %v924
    %v1017 = vunpack.c.l.b16 %v925
    %v1018 = vunpack.c.l.b16 %v926
    %v1019 = vunpack.c.h.b16 %v926
    %v1020 = vunpack.c.l.b16 %v927
    %v1021 = vunpack.c.l.b16 %v928
    %v1022 = vunpack.c.h.b16 %v928
    %v1023 = vunpack.c.l.b16 %v929
    %v1024 = vunpack.c.l.b16 %v930
    %v1025 = vunpack.c.h.b16 %v930
    %v1026 = vunpack.c.l.b16 %v931
    %v1027 = vunpack.c.l.b16 %v932
    %v1028 = vunpack.c.h.b16 %v932
    %v1029 = vunpack.c.l.b16 %v933
    %v1030 = vpack.c.b16 %v985, %v982
    %v1031 = vpack.c.b16 %v986, %v983
    %v1032 = vpack.c.b16 %v987, %v984
    %v1033 = vpack.c.b16 %v991, %v988
    %v1034 = vpack.c.b16 %v992, %v989
    %v1035 = vpack.c.b16 %v993, %v990
    %v1036 = vpack.c.b16 %v997, %v994
    %v1037 = vpack.c.b16 %v998, %v995
    %v1038 = vpack.c.b16 %v999, %v996
    %v1039 = vpack.c.b16 %v1003, %v1000
    %v1040 = vpack.c.b16 %v1004, %v1001
    %v1041 = vpack.c.b16 %v1005, %v1002
    %v1042 = vpack.c.b16 %v1009, %v1006
    %v1043 = vpack.c.b16 %v1010, %v1007
    %v1044 = vpack.c.b16 %v1011, %v1008
    %v1045 = vpack.c.b16 %v1015, %v1012
    %v1046 = vpack.c.b16 %v1016, %v1013
    %v1047 = vpack.c.b16 %v1017, %v1014
    %v1048 = vpack.c.b16 %v1021, %v1018
    %v1049 = vpack.c.b16 %v1022, %v1019
    %v1050 = vpack.c.b16 %v1023, %v1020
    %v1051 = vpack.c.b16 %v1027, %v1024
    %v1052 = vpack.c.b16 %v1028, %v1025
    %v1053 = vpack.c.b16 %v1029, %v1026
    %1078 = vmatprep.subr.bf16.mxu0 %v1052
    %1079 = vmatpush1.bf16.msra.mxu0 %v1051
    %1080 = vmatprep.subr.bf16.mxu0 %v1049
    %1081 = vmatpush1.bf16.msra.mxu0 %v1048
    %1082 = vmatprep.subr.bf16.mxu0 %v1046
    %1083 = vmatpush1.bf16.msra.mxu0 %v1045
    %1084 = vmatprep.subr.bf16.mxu0 %v1043
    %1085 = vmatpush1.bf16.msra.mxu0 %v1042
    %1086 = vmatprep.subr.bf16.mxu0 %v1040
    %1087 = vmatpush1.bf16.msra.mxu0 %v1039
    %1088 = vmatprep.subr.bf16.mxu0 %v1037
    %1089 = vmatpush1.bf16.msra.mxu0 %v1036
    %1090 = vmatprep.subr.bf16.mxu0 %v1034
    %1091 = vmatpush1.bf16.msra.mxu0 %v1033
    %1092 = vmatprep.subr.bf16.mxu0 %v1031
    %1093 = vmatpush1.bf16.msra.mxu0 %v1030
    %1094 = vmatprep.subr.bf16.mxu0 0
    %1095 = vmatpush2.bf16.msra.mxu0 0
    %1096 = vmatprep.subr.bf16.mxu0 0
    %1097 = vmatpush2.bf16.msra.mxu0 0
    %1098 = vmatprep.subr.bf16.mxu0 0
    %1099 = vmatpush2.bf16.msra.mxu0 0
    %1100 = vmatprep.subr.bf16.mxu0 0
    %1101 = vmatpush2.bf16.msra.mxu0 0
    %1102 = vmatprep.subr.bf16.mxu0 0
    %1103 = vmatpush2.bf16.msra.mxu0 0
    %1104 = vmatprep.subr.bf16.mxu0 0
    %1105 = vmatpush2.bf16.msra.mxu0 0
    %1106 = vmatprep.subr.bf16.mxu0 0
    %1107 = vmatpush2.bf16.msra.mxu0 0
    %1108 = vmatprep.subr.bf16.mxu0 0
    %1109 = vmatpush2.bf16.msra.mxu0 0
    %1110 = vmatprep.mubr.bf16.mxu0 0
    %1111 = vmatmul.mubr.bf16.gmra.mxu0 %v941
    %v1112 = vpop.f32.mrf.mxu0
    %v1113 = vadd.f32 0.0, %v1112
    %v1114 = vpop.f32.mrf.mxu0
    %v1115 = vadd.f32 0.0, %v1114
    %v1116 = vpop.f32.mrf.mxu0
    %v1117 = vadd.f32 0.0, %v1116
    %v1118 = vpop.f32.mrf.mxu0
    %v1119 = vadd.f32 0.0, %v1118
    %1120 = vmatprep.mubr.bf16.mxu0 0
    %1121 = vmatmul.mubr.bf16.gmra.mxu0 %v947
    %v1122 = vpop.f32.mrf.mxu0
    %v1123 = vadd.f32 0.0, %v1122
    %v1124 = vpop.f32.mrf.mxu0
    %v1125 = vadd.f32 0.0, %v1124
    %v1126 = vpop.f32.mrf.mxu0
    %v1127 = vadd.f32 0.0, %v1126
    %v1128 = vpop.f32.mrf.mxu0
    %v1129 = vadd.f32 0.0, %v1128
    %1130 = vdwg.mxu0
    %1131 = vmatprep.subr.bf16.mxu0 0
    %1132 = vmatpush1.bf16.msra.mxu0 %v1053
    %1133 = vmatprep.subr.bf16.mxu0 0
    %1134 = vmatpush1.bf16.msra.mxu0 %v1050
    %1135 = vmatprep.subr.bf16.mxu0 0
    %1136 = vmatpush1.bf16.msra.mxu0 %v1047
    %1137 = vmatprep.subr.bf16.mxu0 0
    %1138 = vmatpush1.bf16.msra.mxu0 %v1044
    %1139 = vmatprep.subr.bf16.mxu0 0
    %1140 = vmatpush1.bf16.msra.mxu0 %v1041
    %1141 = vmatprep.subr.bf16.mxu0 0
    %1142 = vmatpush1.bf16.msra.mxu0 %v1038
    %1143 = vmatprep.subr.bf16.mxu0 0
    %1144 = vmatpush1.bf16.msra.mxu0 %v1035
    %1145 = vmatprep.subr.bf16.mxu0 0
    %1146 = vmatpush1.bf16.msra.mxu0 %v1032
    %1147 = vmatprep.subr.bf16.mxu0 0
    %1148 = vmatpush2.bf16.msra.mxu0 0
    %1149 = vmatprep.subr.bf16.mxu0 0
    %1150 = vmatpush2.bf16.msra.mxu0 0
    %1151 = vmatprep.subr.bf16.mxu0 0
    %1152 = vmatpush2.bf16.msra.mxu0 0
    %1153 = vmatprep.subr.bf16.mxu0 0
    %1154 = vmatpush2.bf16.msra.mxu0 0
    %1155 = vmatprep.subr.bf16.mxu0 0
    %1156 = vmatpush2.bf16.msra.mxu0 0
    %1157 = vmatprep.subr.bf16.mxu0 0
    %1158 = vmatpush2.bf16.msra.mxu0 0
    %1159 = vmatprep.subr.bf16.mxu0 0
    %1160 = vmatpush2.bf16.msra.mxu0 0
    %1161 = vmatprep.subr.bf16.mxu0 0
    %1162 = vmatpush2.bf16.msra.mxu0 0
    %1163 = vmatprep.mubr.bf16.mxu0 0
    %1164 = vmatmul.mubr.bf16.gmra.mxu0 %v941
    %v1165 = vpop.f32.mrf.mxu0
    %v1166 = vadd.f32 0.0, %v1165
    %v1167 = vpop.f32.mrf.mxu0
    %v1168 = vpop.f32.mrf.mxu0
    %v1169 = vadd.f32 0.0, %v1168
    %v1170 = vpop.f32.mrf.mxu0
    %1171 = vmatprep.mubr.bf16.mxu0 0
    %1172 = vmatmul.mubr.bf16.gmra.mxu0 %v947
    %v1173 = vpop.f32.mrf.mxu0
    %v1174 = vadd.f32 0.0, %v1173
    %v1175 = vpop.f32.mrf.mxu0
    %v1176 = vpop.f32.mrf.mxu0
    %v1177 = vadd.f32 0.0, %v1176
    %v1178 = vpop.f32.mrf.mxu0
    %1179 = vdwg.mxu0
    %v1180 = vadd.f32 %v890, %v1113
    %v1181 = vadd.f32 %v891, %v1115
    %v1182 = vadd.f32 %v892, %v1166
    %v1183 = vadd.f32 %v893, %v1117
    %v1184 = vadd.f32 %v894, %v1119
    %v1185 = vadd.f32 %v895, %v1169
    %v1186 = vadd.f32 %v896, %v1123
    %v1187 = vadd.f32 %v897, %v1125
    %v1188 = vadd.f32 %v898, %v1174
    %v1189 = vadd.f32 %v899, %v1127
    %v1190 = vadd.f32 %v900, %v1129
    %v1191 = vadd.f32 %v901, %v1177
    %v1192 = vld [vmem:[#allocation2 + $0x300] sm:$0xff]
    %v1193 = vld [vmem:[#allocation2 + $0x308] sm:$0xf]
    %v1194 = vld [vmem:[#allocation2 + $0x30c] sm:$0xff]
    %v1195 = vld [vmem:[#allocation2 + $0x314] sm:$0xf]
    %v1196 = vld [vmem:[#allocation2 + $0x318] sm:$0xff]
    %v1197 = vld [vmem:[#allocation2 + $0x320] sm:$0xf]
    %v1198 = vld [vmem:[#allocation2 + $0x324] sm:$0xff]
    %v1199 = vld [vmem:[#allocation2 + $0x32c] sm:$0xf]
    %v1200 = vld [vmem:[#allocation2 + $0x330] sm:$0xff]
    %v1201 = vld [vmem:[#allocation2 + $0x338] sm:$0xf]
    %v1202 = vld [vmem:[#allocation2 + $0x33c] sm:$0xff]
    %v1203 = vld [vmem:[#allocation2 + $0x344] sm:$0xf]
    %v1204 = vld [vmem:[#allocation2 + $0x348] sm:$0xff]
    %v1205 = vld [vmem:[#allocation2 + $0x350] sm:$0xf]
    %v1206 = vld [vmem:[#allocation2 + $0x354] sm:$0xff]
    %v1207 = vld [vmem:[#allocation2 + $0x35c] sm:$0xf]
    %v1208 = vld [vmem:[#allocation2 + $0x360] sm:$0xff]
    %v1209 = vld [vmem:[#allocation2 + $0x368] sm:$0xf]
    %v1210 = vld [vmem:[#allocation2 + $0x36c] sm:$0xff]
    %v1211 = vld [vmem:[#allocation2 + $0x374] sm:$0xf]
    %v1212 = vld [vmem:[#allocation2 + $0x378] sm:$0xff]
    %v1213 = vld [vmem:[#allocation2 + $0x380] sm:$0xf]
    %v1214 = vld [vmem:[#allocation2 + $0x384] sm:$0xff]
    %v1215 = vld [vmem:[#allocation2 + $0x38c] sm:$0xf]
    %v1216 = vld [vmem:[#allocation2 + $0x390] sm:$0xff]
    %v1217 = vld [vmem:[#allocation2 + $0x398] sm:$0xf]
    %v1218 = vld [vmem:[#allocation2 + $0x39c] sm:$0xff]
    %v1219 = vld [vmem:[#allocation2 + $0x3a4] sm:$0xf]
    %v1220 = vld [vmem:[#allocation2 + $0x3a8] sm:$0xff]
    %v1221 = vld [vmem:[#allocation2 + $0x3b0] sm:$0xf]
    %v1222 = vld [vmem:[#allocation2 + $0x3b4] sm:$0xff]
    %v1223 = vld [vmem:[#allocation2 + $0x3bc] sm:$0xf]
    %vm1224 = vcmask 1045504
    %v1225 = vrot.slane %v61, 2
    %v1226 = vrot.slane %v62, 2
    %v1227 = vsel %vm1224, %v1225, %v1226
    %v1228 = vrot.slane %v101, 2
    %v1229 = vsel %vm1224, %v1226, %v1228
    %v1264 = vunpack.c.l.b16 %v1192
    %v1265 = vunpack.c.h.b16 %v1192
    %v1266 = vunpack.c.l.b16 %v1193
    %v1267 = vunpack.c.l.b16 %v1194
    %v1268 = vunpack.c.h.b16 %v1194
    %v1269 = vunpack.c.l.b16 %v1195
    %v1270 = vunpack.c.l.b16 %v1196
    %v1271 = vunpack.c.h.b16 %v1196
    %v1272 = vunpack.c.l.b16 %v1197
    %v1273 = vunpack.c.l.b16 %v1198
    %v1274 = vunpack.c.h.b16 %v1198
    %v1275 = vunpack.c.l.b16 %v1199
    %v1276 = vunpack.c.l.b16 %v1200
    %v1277 = vunpack.c.h.b16 %v1200
    %v1278 = vunpack.c.l.b16 %v1201
    %v1279 = vunpack.c.l.b16 %v1202
    %v1280 = vunpack.c.h.b16 %v1202
    %v1281 = vunpack.c.l.b16 %v1203
    %v1282 = vunpack.c.l.b16 %v1204
    %v1283 = vunpack.c.h.b16 %v1204
    %v1284 = vunpack.c.l.b16 %v1205
    %v1285 = vunpack.c.l.b16 %v1206
    %v1286 = vunpack.c.h.b16 %v1206
    %v1287 = vunpack.c.l.b16 %v1207
    %v1288 = vunpack.c.l.b16 %v1208
    %v1289 = vunpack.c.h.b16 %v1208
    %v1290 = vunpack.c.l.b16 %v1209
    %v1291 = vunpack.c.l.b16 %v1210
    %v1292 = vunpack.c.h.b16 %v1210
    %v1293 = vunpack.c.l.b16 %v1211
    %v1294 = vunpack.c.l.b16 %v1212
    %v1295 = vunpack.c.h.b16 %v1212
    %v1296 = vunpack.c.l.b16 %v1213
    %v1297 = vunpack.c.l.b16 %v1214
    %v1298 = vunpack.c.h.b16 %v1214
    %v1299 = vunpack.c.l.b16 %v1215
    %v1300 = vunpack.c.l.b16 %v1216
    %v1301 = vunpack.c.h.b16 %v1216
    %v1302 = vunpack.c.l.b16 %v1217
    %v1303 = vunpack.c.l.b16 %v1218
    %v1304 = vunpack.c.h.b16 %v1218
    %v1305 = vunpack.c.l.b16 %v1219
    %v1306 = vunpack.c.l.b16 %v1220
    %v1307 = vunpack.c.h.b16 %v1220
    %v1308 = vunpack.c.l.b16 %v1221
    %v1309 = vunpack.c.l.b16 %v1222
    %v1310 = vunpack.c.h.b16 %v1222
    %v1311 = vunpack.c.l.b16 %v1223
    %v1312 = vpack.c.b16 %v1267, %v1264
    %v1313 = vpack.c.b16 %v1268, %v1265
    %v1314 = vpack.c.b16 %v1269, %v1266
    %v1315 = vpack.c.b16 %v1273, %v1270
    %v1316 = vpack.c.b16 %v1274, %v1271
    %v1317 = vpack.c.b16 %v1275, %v1272
    %v1318 = vpack.c.b16 %v1279, %v1276
    %v1319 = vpack.c.b16 %v1280, %v1277
    %v1320 = vpack.c.b16 %v1281, %v1278
    %v1321 = vpack.c.b16 %v1285, %v1282
    %v1322 = vpack.c.b16 %v1286, %v1283
    %v1323 = vpack.c.b16 %v1287, %v1284
    %v1324 = vpack.c.b16 %v1291, %v1288
    %v1325 = vpack.c.b16 %v1292, %v1289
    %v1326 = vpack.c.b16 %v1293, %v1290
    %v1327 = vpack.c.b16 %v1297, %v1294
    %v1328 = vpack.c.b16 %v1298, %v1295
    %v1329 = vpack.c.b16 %v1299, %v1296
    %v1330 = vpack.c.b16 %v1303, %v1300
    %v1331 = vpack.c.b16 %v1304, %v1301
    %v1332 = vpack.c.b16 %v1305, %v1302
    %v1333 = vpack.c.b16 %v1309, %v1306
    %v1334 = vpack.c.b16 %v1310, %v1307
    %v1335 = vpack.c.b16 %v1311, %v1308
    %1360 = vmatprep.subr.bf16.mxu0 %v1334
    %1361 = vmatpush1.bf16.msra.mxu0 %v1333
    %1362 = vmatprep.subr.bf16.mxu0 %v1331
    %1363 = vmatpush1.bf16.msra.mxu0 %v1330
    %1364 = vmatprep.subr.bf16.mxu0 %v1328
    %1365 = vmatpush1.bf16.msra.mxu0 %v1327
    %1366 = vmatprep.subr.bf16.mxu0 %v1325
    %1367 = vmatpush1.bf16.msra.mxu0 %v1324
    %1368 = vmatprep.subr.bf16.mxu0 %v1322
    %1369 = vmatpush1.bf16.msra.mxu0 %v1321
    %1370 = vmatprep.subr.bf16.mxu0 %v1319
    %1371 = vmatpush1.bf16.msra.mxu0 %v1318
    %1372 = vmatprep.subr.bf16.mxu0 %v1316
    %1373 = vmatpush1.bf16.msra.mxu0 %v1315
    %1374 = vmatprep.subr.bf16.mxu0 %v1313
    %1375 = vmatpush1.bf16.msra.mxu0 %v1312
    %1376 = vmatprep.subr.bf16.mxu0 0
    %1377 = vmatpush2.bf16.msra.mxu0 0
    %1378 = vmatprep.subr.bf16.mxu0 0
    %1379 = vmatpush2.bf16.msra.mxu0 0
    %1380 = vmatprep.subr.bf16.mxu0 0
    %1381 = vmatpush2.bf16.msra.mxu0 0
    %1382 = vmatprep.subr.bf16.mxu0 0
    %1383 = vmatpush2.bf16.msra.mxu0 0
    %1384 = vmatprep.subr.bf16.mxu0 0
    %1385 = vmatpush2.bf16.msra.mxu0 0
    %1386 = vmatprep.subr.bf16.mxu0 0
    %1387 = vmatpush2.bf16.msra.mxu0 0
    %1388 = vmatprep.subr.bf16.mxu0 0
    %1389 = vmatpush2.bf16.msra.mxu0 0
    %1390 = vmatprep.subr.bf16.mxu0 0
    %1391 = vmatpush2.bf16.msra.mxu0 0
    %1392 = vmatprep.mubr.bf16.mxu0 0
    %1393 = vmatmul.mubr.bf16.gmra.mxu0 %v1227
    %v1394 = vpop.f32.mrf.mxu0
    %v1395 = vadd.f32 0.0, %v1394
    %v1396 = vpop.f32.mrf.mxu0
    %v1397 = vadd.f32 0.0, %v1396
    %v1398 = vpop.f32.mrf.mxu0
    %v1399 = vadd.f32 0.0, %v1398
    %v1400 = vpop.f32.mrf.mxu0
    %v1401 = vadd.f32 0.0, %v1400
    %1402 = vmatprep.mubr.bf16.mxu0 0
    %1403 = vmatmul.mubr.bf16.gmra.mxu0 %v1229
    %v1404 = vpop.f32.mrf.mxu0
    %v1405 = vadd.f32 0.0, %v1404
    %v1406 = vpop.f32.mrf.mxu0
    %v1407 = vadd.f32 0.0, %v1406
    %v1408 = vpop.f32.mrf.mxu0
    %v1409 = vadd.f32 0.0, %v1408
    %v1410 = vpop.f32.mrf.mxu0
    %v1411 = vadd.f32 0.0, %v1410
    %1412 = vdwg.mxu0
    %1413 = vmatprep.subr.bf16.mxu0 0
    %1414 = vmatpush1.bf16.msra.mxu0 %v1335
    %1415 = vmatprep.subr.bf16.mxu0 0
    %1416 = vmatpush1.bf16.msra.mxu0 %v1332
    %1417 = vmatprep.subr.bf16.mxu0 0
    %1418 = vmatpush1.bf16.msra.mxu0 %v1329
    %1419 = vmatprep.subr.bf16.mxu0 0
    %1420 = vmatpush1.bf16.msra.mxu0 %v1326
    %1421 = vmatprep.subr.bf16.mxu0 0
    %1422 = vmatpush1.bf16.msra.mxu0 %v1323
    %1423 = vmatprep.subr.bf16.mxu0 0
    %1424 = vmatpush1.bf16.msra.mxu0 %v1320
    %1425 = vmatprep.subr.bf16.mxu0 0
    %1426 = vmatpush1.bf16.msra.mxu0 %v1317
    %1427 = vmatprep.subr.bf16.mxu0 0
    %1428 = vmatpush1.bf16.msra.mxu0 %v1314
    %1429 = vmatprep.subr.bf16.mxu0 0
    %1430 = vmatpush2.bf16.msra.mxu0 0
    %1431 = vmatprep.subr.bf16.mxu0 0
    %1432 = vmatpush2.bf16.msra.mxu0 0
    %1433 = vmatprep.subr.bf16.mxu0 0
    %1434 = vmatpush2.bf16.msra.mxu0 0
    %1435 = vmatprep.subr.bf16.mxu0 0
    %1436 = vmatpush2.bf16.msra.mxu0 0
    %1437 = vmatprep.subr.bf16.mxu0 0
    %1438 = vmatpush2.bf16.msra.mxu0 0
    %1439 = vmatprep.subr.bf16.mxu0 0
    %1440 = vmatpush2.bf16.msra.mxu0 0
    %1441 = vmatprep.subr.bf16.mxu0 0
    %1442 = vmatpush2.bf16.msra.mxu0 0
    %1443 = vmatprep.subr.bf16.mxu0 0
    %1444 = vmatpush2.bf16.msra.mxu0 0
    %1445 = vmatprep.mubr.bf16.mxu0 0
    %1446 = vmatmul.mubr.bf16.gmra.mxu0 %v1227
    %v1447 = vpop.f32.mrf.mxu0
    %v1448 = vadd.f32 0.0, %v1447
    %v1449 = vpop.f32.mrf.mxu0
    %v1450 = vpop.f32.mrf.mxu0
    %v1451 = vadd.f32 0.0, %v1450
    %v1452 = vpop.f32.mrf.mxu0
    %1453 = vmatprep.mubr.bf16.mxu0 0
    %1454 = vmatmul.mubr.bf16.gmra.mxu0 %v1229
    %v1455 = vpop.f32.mrf.mxu0
    %v1456 = vadd.f32 0.0, %v1455
    %v1457 = vpop.f32.mrf.mxu0
    %v1458 = vpop.f32.mrf.mxu0
    %v1459 = vadd.f32 0.0, %v1458
    %v1460 = vpop.f32.mrf.mxu0
    %1461 = vdwg.mxu0
    %v1462 = vadd.f32 %v1180, %v1395
    %v1463 = vadd.f32 %v1181, %v1397
    %v1464 = vadd.f32 %v1182, %v1448
    %v1465 = vadd.f32 %v1183, %v1399
    %v1466 = vadd.f32 %v1184, %v1401
    %v1467 = vadd.f32 %v1185, %v1451
    %v1468 = vadd.f32 %v1186, %v1405
    %v1469 = vadd.f32 %v1187, %v1407
    %v1470 = vadd.f32 %v1188, %v1456
    %v1471 = vadd.f32 %v1189, %v1409
    %v1472 = vadd.f32 %v1190, %v1411
    %v1473 = vadd.f32 %v1191, %v1459
    %v1474 = vadd.s32 %v36, 128
    %v1475 = vadd.s32 %v36, 256
    %v1476 = vlaneseq
    %v1477 = vshrl.u32 %v1476, 7
    %v1478 = vadd.s32 %v1477, 8
    %vm1479 = vcmp.lt.s32.totalorder %v36, 100
    %vm1480 = vcmp.lt.s32.totalorder %v1474, 100
    %vm1481 = vcmp.lt.s32.totalorder %v1475, 100
    %vm1482 = vcmp.lt.s32.totalorder %v36, 200
    %vm1483 = vcmp.lt.s32.totalorder %v1474, 200
    %vm1484 = vcmp.lt.s32.totalorder %v1475, 200
    %v1485 = vsel %vm1482, 12, 11
    %v1486 = vsel %vm1483, 12, 11
    %v1487 = vsel %vm1484, 12, 11
    %v1488 = vsel %vm1479, 13, %v1485
    %v1489 = vsel %vm1480, 13, %v1486
    %v1490 = vsel %vm1481, 13, %v1487
    %vm1491 = vcmp.le.s32.totalorder %v1477, %v1488
    %vm1492 = vcmp.le.s32.totalorder %v1477, %v1489
    %vm1493 = vcmp.le.s32.totalorder %v1477, %v1490
    %vm1494 = vcmp.le.s32.totalorder %v1478, %v1488
    %vm1495 = vcmp.le.s32.totalorder %v1478, %v1489
    %vm1496 = vcmp.le.s32.totalorder %v1478, %v1490
    %v1497 = vsel %vm1491, 0.0, -1e+30
    %v1498 = vsel %vm1492, 0.0, -1e+30
    %v1499 = vsel %vm1493, 0.0, -1e+30
    %v1500 = vsel %vm1494, 0.0, -1e+30
    %v1501 = vsel %vm1495, 0.0, -1e+30
    %v1502 = vsel %vm1496, 0.0, -1e+30
    %v1503 = vadd.f32 %v1462, %v1497
    %v1504 = vadd.f32 %v1463, %v1498
    %v1505 = vadd.f32 %v1464, %v1499
    %v1506 = vadd.f32 %v1465, %v1500
    %v1507 = vadd.f32 %v1466, %v1501
    %v1508 = vadd.f32 %v1467, %v1502
    %v1509 = vadd.f32 %v1468, %v1497
    %v1510 = vadd.f32 %v1469, %v1498
    %v1511 = vadd.f32 %v1470, %v1499
    %v1512 = vadd.f32 %v1471, %v1500
    %v1513 = vadd.f32 %v1472, %v1501
    %v1514 = vadd.f32 %v1473, %v1502
    %v1515 = vmax.f32 %v1503, %v1506
    %v1516 = vrot.slane %v1515, 4
    %v1517 = vmax.f32 %v1515, %v1516
    %v1518 = vrot.slane %v1517, 2
    %v1519 = vmax.f32 %v1517, %v1518
    %v1520 = vrot.slane %v1519, 1
    %v1521 = vmax.f32 %v1519, %v1520
    %v1522 = vmax.f32 %v1504, %v1507
    %v1523 = vrot.slane %v1522, 4
    %v1524 = vmax.f32 %v1522, %v1523
    %v1525 = vrot.slane %v1524, 2
    %v1526 = vmax.f32 %v1524, %v1525
    %v1527 = vrot.slane %v1526, 1
    %v1528 = vmax.f32 %v1526, %v1527
    %v1529 = vmax.f32 %v1505, %v1508
    %v1530 = vrot.slane %v1529, 4
    %v1531 = vmax.f32 %v1529, %v1530
    %v1532 = vrot.slane %v1531, 2
    %v1533 = vmax.f32 %v1531, %v1532
    %v1534 = vrot.slane %v1533, 1
    %v1535 = vmax.f32 %v1533, %v1534
    %v1536 = vmax.f32 %v1509, %v1512
    %v1537 = vrot.slane %v1536, 4
    %v1538 = vmax.f32 %v1536, %v1537
    %v1539 = vrot.slane %v1538, 2
    %v1540 = vmax.f32 %v1538, %v1539
    %v1541 = vrot.slane %v1540, 1
    %v1542 = vmax.f32 %v1540, %v1541
    %v1543 = vmax.f32 %v1510, %v1513
    %v1544 = vrot.slane %v1543, 4
    %v1545 = vmax.f32 %v1543, %v1544
    %v1546 = vrot.slane %v1545, 2
    %v1547 = vmax.f32 %v1545, %v1546
    %v1548 = vrot.slane %v1547, 1
    %v1549 = vmax.f32 %v1547, %v1548
    %v1550 = vmax.f32 %v1511, %v1514
    %v1551 = vrot.slane %v1550, 4
    %v1552 = vmax.f32 %v1550, %v1551
    %v1553 = vrot.slane %v1552, 2
    %v1554 = vmax.f32 %v1552, %v1553
    %v1555 = vrot.slane %v1554, 1
    %v1556 = vmax.f32 %v1554, %v1555
    %v1557 = vld [vmem:[%s2] sm:$0x7]
    %v1559 = vlaneseq
    %v1560 = vshrl.u32 %v1559, 7
    %v1561 = vsub.s32 0, %v1560
    %v1562 = vrot.slane %v1557, %v1561
    %v1563 = vlaneseq
    %v1564 = vshrl.u32 %v1563, 7
    %v1565 = vsub.s32 1, %v1564
    %v1566 = vrot.slane %v1557, %v1565
    %v1567 = vlaneseq
    %v1568 = vshrl.u32 %v1567, 7
    %v1569 = vsub.s32 2, %v1568
    %v1570 = vrot.slane %v1557, %v1569
    %v1574 = vadd.f32 %v1521, %v1562
    %v1575 = vadd.f32 %v1528, %v1566
    %v1576 = vadd.f32 %v1535, %v1570
    %v1577 = vadd.f32 %v1542, %v1562
    %v1578 = vadd.f32 %v1549, %v1566
    %v1579 = vadd.f32 %v1556, %v1570
    %v1580 = vmax.f32 %v1574, 0.0
    %v1581 = vmax.f32 %v1575, 0.0
    %v1582 = vmax.f32 %v1576, 0.0
    %v1583 = vmax.f32 %v1577, 0.0
    %v1584 = vmax.f32 %v1578, 0.0
    %v1585 = vmax.f32 %v1579, 0.0
    %v1592 = vcombine.low %v1580, %v1581
    %v1594 = vunpack.c.l.s4 1983009808
    %v1595 = vunpack.c.0.s8 %v1594
    %v1596 = vlaneseq
    %v1597 = vshrl.u32 %v1596, 7
    %v1598 = vsub.s32 %v1595, %v1597
    %v1599 = vrot.slane %v1592, %v1598
    %v1601 = vunpack.c.l.s4 1983009808
    %v1602 = vunpack.c.0.s8 %v1601
    %v1603 = vlaneseq
    %v1604 = vshrl.u32 %v1603, 7
    %v1605 = vsub.s32 %v1602, %v1604
    %v1606 = vrot.slane %v1582, %v1605
    %v1607 = vcombine.low %v1599, %v1606
    %v1608 = vcombine.low %v1583, %v1584
    %v1610 = vunpack.c.l.s4 1983009808
    %v1611 = vunpack.c.0.s8 %v1610
    %v1612 = vlaneseq
    %v1613 = vshrl.u32 %v1612, 7
    %v1614 = vsub.s32 %v1611, %v1613
    %v1615 = vrot.slane %v1608, %v1614
    %v1617 = vunpack.c.l.s4 1983009808
    %v1618 = vunpack.c.0.s8 %v1617
    %v1619 = vlaneseq
    %v1620 = vshrl.u32 %v1619, 7
    %v1621 = vsub.s32 %v1618, %v1620
    %v1622 = vrot.slane %v1585, %v1621
    %v1623 = vcombine.low %v1615, %v1622
    %vm1624 = vcmask 1044484
    %v1625 = vsel %vm1624, %v1607, %v1607
    %vm1626 = vcmask 1046534
    %v1627 = vsel %vm1626, %v1607, %v1625
    %v1628 = vrot.slane %v1623, 7
    %vm1629 = vcmask 1041409
    %v1630 = vsel %vm1629, %v1628, %v1627
    %vm1631 = vcmask 1043459
    %v1632 = vsel %vm1631, %v1628, %v1630
    %vm1633 = vcmask 1045509
    %v1634 = vsel %vm1633, %v1628, %v1632
    %vm1635 = vcmask 1047559
    %v1636 = vsel %vm1635, %v1628, %v1634
    %1638 = vst [vmem:[#allocation5] sm:$0x3f] %v1636
    // Predicated region
    $region18: #{tpu_custom_call.1} parent=1 // pred_check
      _
    $region19: #{tpu_custom_call.1} parent=1 // pred_check_branch
      %1640 = sbr.rel (0) target = $region21
    $region20: #{tpu_custom_call.1} parent=1 // pred_region
      %s1642 = ssub.s32 96, 96
      %1643 = vsyncadd [#allocation4], %s1642
      %s1645 = sshll.u32 [#allocation5], 4
      %s1646 = int_to_ptr.vmem [resolvable:$true] %s1645
      %1648 = dma.vmem_to_hbm [thread:$0]  %s1646, 96, %s3, [#allocation4]
    $region21: #{tpu_custom_call.1} parent=1 // pred_fallthru
      _
    // Predicated region
    $region22: #{tpu_custom_call.1} parent=1 // pred_check
      _
    $region23: #{tpu_custom_call.1} parent=1 // pred_check_branch
      %1650 = sbr.rel (0) target = $region25
    $region24: #{tpu_custom_call.1} parent=1 // pred_region
      %1651 = dma.done [#allocation4], 96
    $region25: #{tpu_custom_call.1} parent=1 // pred_fallthru
      _
    %1652 = vsyncpa [#allocation3], 1
    %1653 = vsyncpa [#allocation4], 1

</llo_original>
